<compile_context>
chip_gen: v5e
topology: v5e:2x2
jax: 0.10.0
libtpu: 0.0.40
codegen_flags: <defaults>
</compile_context>

<pallas_src>
import numpy as np
import jax
import jax.numpy as jnp
from jax import lax
from jax.experimental import pallas as pl
from jax.experimental.pallas import tpu as pltpu

# ------------------------- small synthetic config ---------------------------
B, T = 2, 8                      # batch, seq len
WORD_VOCAB, UPOS_VOCAB = 50, 12
GRAPH_VOCAB = 7                  # len(vocab['graph'])
PRETRAIN_VOCAB, PRETRAIN_DIM = 40, 12
WORD_EMB, TAG_EMB, TRANSFORMED = 16, 8, 8
HIDDEN = 16                      # args['hidden_dim'] (per LSTM direction)
LSTM_OUT = 2 * HIDDEN            # 32
BIAFF_HID = 32                   # args['deep_biaff_hidden_dim']
INPUT_SIZE = TRANSFORMED + WORD_EMB + TAG_EMB   # pretrained + word + upos

F32 = jnp.float32
BF16 = jnp.bfloat16


def _round_up(n, m):
  return ((n + m - 1) // m) * m


# ============================ fused Pallas kernel ============================

def _parser_scorer_kernel(xi_ref, xj_ref, wq_ref, bq_ref, wk_ref, bk_ref,
                          wu_ref, ud_ref, mcol_ref, mrow_ref,
                          out_ref, yu_ref, v_ref, sd_ref):
  """Fused biaffine scorers + eval combine for one (batch, i-tile, j-tile).

  grid = (B, nTj, nTi); i (query-row tiles) is innermost / "arbitrary".

  xi_ref  : (1, Ti, D)   lstm outputs, query-row tile (dependents)
  xj_ref  : (1, Tj, D)   lstm outputs, head-column tile
  wq_ref  : (D, 2*HP)    [W1_u | W1_d] transposed, padded, bf16
  bq_ref  : (1, 2*HP)    matching biases, ones-lane at col H of each head (f32)
  wk_ref  : (D, 2*HP)    [W2_u | W2_d]
  bk_ref  : (1, 2*HP)
  wu_ref  : (HP, HP)     augmented unlabeled bilinear (u1/u2/const/bias folded)
  ud_ref  : (O*HP, HP)   augmented deprel bilinear, label-major, bf16
  mcol_ref: (1, Ti, 1)   float validity mask (dependents)
  mrow_ref: (1, 1, Tj)   float validity mask (heads)
  out_ref : (1, O, Ti, Tj)  bf16  sigmoid(head)*softmax_labels(deprel)*weights
  yu_ref  : VMEM (HP, Tj) bf16     cached  Wu_aug @ h2u_aug^T   (per j tile)
  v_ref   : VMEM (O, HP, Tj) bf16  cached  Ud_aug @ h2d_aug^T   (per j tile)
  sd_ref  : VMEM (O, Ti, Tj) f32   per-tile deprel scores
  """
  i = pl.program_id(2)
  HP = wu_ref.shape[0]
  O_ = v_ref.shape[0]
  Tj = xj_ref.shape[1]

  # ---- per-j-tile intermediates: computed once, reused for every i tile ----
  @pl.when(i == 0)
  def _():
    xj = xj_ref[0].astype(BF16)                                     # (Tj, D)
    hk = jnp.maximum(
        jnp.dot(xj, wk_ref[...], preferred_element_type=jnp.float32)
        + bk_ref[...], 0.0)                                         # (Tj, 2HP)
    h2u = hk[:, :HP].astype(BF16)        # lane-aligned static slices (HP=128k)
    h2d = hk[:, HP:].astype(BF16)
    # yu = Wu_aug @ h2u_aug^T  -> (HP, Tj); rank-1/bias terms already inside.
    yu_ref[...] = lax.dot_general(
        wu_ref[...], h2u, (((1,), (1,)), ((), ())),
        preferred_element_type=jnp.float32).astype(BF16)
    # V = Ud_aug @ h2d_aug^T -> (O*HP, Tj) -> (O, HP, Tj): one big matmul,
    # reshape is a free sublane regroup (HP multiple of 8).
    v = lax.dot_general(
        ud_ref[...], h2d, (((1,), (1,)), ((), ())),
        preferred_element_type=jnp.float32)
    v_ref[...] = v.reshape(O_, HP, Tj).astype(BF16)

  # ---- per-i-tile hidden projections (query side only: half of wcat) -------
  xi = xi_ref[0].astype(BF16)                                       # (Ti, D)
  hq = jnp.maximum(
      jnp.dot(xi, wq_ref[...], preferred_element_type=jnp.float32)
      + bq_ref[...], 0.0)                                           # (Ti, 2HP)
  h1u = hq[:, :HP].astype(BF16)
  h1d = hq[:, HP:].astype(BF16)

  # ---- unlabeled (head) scores ----------------------------------------------
  su = jnp.dot(h1u, yu_ref[...], preferred_element_type=jnp.float32)  # (Ti,Tj)
  w = mcol_ref[0] * mrow_ref[0]                                       # (Ti,Tj)
  # sigmoid via EUP reciprocal; masked positions get exactly 0 via w.
  head_w = w * pl.reciprocal(1.0 + jnp.exp(-su), approx=True)

  # ---- deprel (label) scores: per-label matmul, h1d stays shared ------------
  def label_body(o, carry):
    sd_ref[o] = jnp.dot(h1d, v_ref[o], preferred_element_type=jnp.float32)
    return carry
  lax.fori_loop(0, O_, label_body, 0, unroll=True)

  # ---- label softmax * sigmoid(head) * mask; divides hoisted off O*T*T ------
  sd = sd_ref[...]                                                   # (O,Ti,Tj)
  e = jnp.exp(sd - jnp.max(sd, axis=0, keepdims=True))
  scale = head_w * pl.reciprocal(jnp.sum(e, axis=0), approx=True)    # (Ti,Tj)
  out_ref[0] = (scale[None, :, :] * e).astype(out_ref.dtype)


def fused_parser_scorer_pallas(lstm_out, wq, bq, wk, bk, wu, ud, mcol, mrow,
                               tile=None):
  Bn, Tn, Dn = lstm_out.shape
  HP = wu.shape[0]
  O_ = ud.shape[0] // HP
  Ti = Tj = tile if tile is not None else min(Tn, 128)
  assert Tn % Ti == 0 and Tn % Tj == 0
  grid = (Bn, Tn // Tj, Tn // Ti)      # i (query rows) innermost

  return pl.pallas_call(
      _parser_scorer_kernel,
      out_shape=jax.ShapeDtypeStruct((Bn, O_, Tn, Tn), BF16),
      grid=grid,
      in_specs=[
          pl.BlockSpec((1, Ti, Dn), lambda b, j, i: (b, i, 0)),   # query rows
          pl.BlockSpec((1, Tj, Dn), lambda b, j, i: (b, j, 0)),   # head cols
          # weights: constant block index -> staged into VMEM once, resident
          # across the whole grid (no per-step re-DMA).
          pl.BlockSpec((Dn, 2 * HP), lambda b, j, i: (0, 0)),
          pl.BlockSpec((1, 2 * HP), lambda b, j, i: (0, 0)),
          pl.BlockSpec((Dn, 2 * HP), lambda b, j, i: (0, 0)),
          pl.BlockSpec((1, 2 * HP), lambda b, j, i: (0, 0)),
          pl.BlockSpec((HP, HP), lambda b, j, i: (0, 0)),
          pl.BlockSpec((O_ * HP, HP), lambda b, j, i: (0, 0)),
          pl.BlockSpec((1, Ti, 1), lambda b, j, i: (b, i, 0)),
          pl.BlockSpec((1, 1, Tj), lambda b, j, i: (b, 0, j)),
      ],
      out_specs=pl.BlockSpec((1, O_, Ti, Tj), lambda b, j, i: (b, 0, i, j)),
      scratch_shapes=[
          pltpu.VMEM((HP, Tj), BF16),          # yu cache (per j tile)
          pltpu.VMEM((O_, HP, Tj), BF16),      # V cache  (per j tile)
          pltpu.VMEM((O_, Ti, Tj), jnp.float32),
      ],
      compiler_params=pltpu.CompilerParams(
          # batch / j-tiles shardable across v7x's 2 TCs; i carries the cache.
          dimension_semantics=("parallel", "parallel", "arbitrary"),
          vmem_limit_bytes=48 * 1024 * 1024),
  )(lstm_out, lstm_out, wq, bq, wk, bk, wu, ud, mcol, mrow)


# ============================== plain-JAX glue ===============================

def fused_scorer_args(p_un, p_dep, lane_pad=128):
  """Pack both DeepBiaffine scorers for the fused kernel (constant-folded
  under jit).  All rank-1 / bias terms are folded into augmented bilinear
  weights; hidden dims padded to HP = round_up(H+1, lane_pad) so kernel
  slices are lane-tile aligned.  MXU operands emitted as bf16."""
  H, D = p_un['w1'].shape
  HP = _round_up(H + 1, lane_pad)
  O = p_dep['W'].shape[-1]

  def proj(w, b):
    # (H, D) weight, (H,) bias -> (D, HP), (HP,) with a free ones-lane at col
    # H: zero weight column + bias 1.0 under ReLU gives exactly 1.0.
    wp = jnp.zeros((D, HP), F32).at[:, :H].set(w.T)
    bp = jnp.zeros((HP,), F32).at[:H].set(b).at[H].set(1.0)
    return wp, bp

  w1u, b1u = proj(p_un['w1'], p_un['b1'])
  w1d, b1d = proj(p_dep['w1'], p_dep['b1'])
  w2u, b2u = proj(p_un['w2'], p_un['b2'])
  w2d, b2d = proj(p_dep['w2'], p_dep['b2'])
  wq = jnp.concatenate([w1u, w1d], axis=1).astype(BF16)    # (D, 2HP)
  bq = jnp.concatenate([b1u, b1d])[None, :]                # (1, 2HP) f32
  wk = jnp.concatenate([w2u, w2d], axis=1).astype(BF16)
  bk = jnp.concatenate([b2u, b2d])[None, :]

  # unlabeled bilinear: (H+1,H+1) already contains u1/u2/const rows; add the
  # output bias at [H,H] (both augmented ones-lanes multiply it).
  Wu = p_un['W'][:, :, 0]                                  # (H+1, H+1)
  wu = jnp.zeros((HP, HP), F32).at[:H + 1, :H + 1].set(Wu)
  wu = wu.at[H, H].add(p_un['bias'][0]).astype(BF16)

  # deprel bilinear: label-major augmented stack (O*HP, HP).
  Wd = jnp.transpose(p_dep['W'], (2, 0, 1))                # (O, H+1, H+1)
  ud = jnp.zeros((O, HP, HP), F32).at[:, :H + 1, :H + 1].set(Wd)
  ud = ud.at[:, H, H].add(p_dep['bias'])
  ud = ud.reshape(O * HP, HP).astype(BF16)
  return wq, bq, wk, bk, wu, ud


def bilstm(x, valid, p):
  """Both LSTM directions in ONE lax.scan (stacked gates), input projection
  hoisted out of the scan.  Packed-sequence masking emulated."""
  Bn, Tn, _ = x.shape
  Hn = p['Whh_f'].shape[1]
  Wih = jnp.stack([p['Wih_f'], p['Wih_b']])                # (2, 4H, Din)
  bih = jnp.stack([p['bih_f'], p['bih_b']])                # (2, 4H)
  Whh = jnp.stack([p['Whh_f'], p['Whh_b']])                # (2, 4H, H)
  bhh = jnp.stack([p['bhh_f'], p['bhh_b']])                # (2, 4H)

  m = valid.astype(x.dtype)
  # Hoisted input projection: one batched matmul for both directions.
  xg = jnp.einsum('btd,kgd->kbtg', x, Wih) + bih[:, None, None, :]  # (2,B,T,4H)
  ms = jnp.swapaxes(m, 0, 1)[:, None, :, None]             # (T, 1, B, 1)
  xs = jnp.stack([jnp.swapaxes(xg[0], 0, 1),
                  jnp.swapaxes(xg[1], 0, 1)[::-1]], axis=1)  # (T, 2, B, 4H)
  mm = jnp.concatenate([ms, ms[::-1]], axis=1)               # (T, 2, B, 1)

  def step(carry, inp):
    h, c = carry                                  # (2, B, H) each
    gx, mt = inp                                  # (2, B, 4H), (2, B, 1)
    gates = gx + jnp.einsum('kbh,kgh->kbg', h, Whh) + bhh[:, None, :]
    i_, f_, g_, o_ = jnp.split(gates, 4, axis=-1)
    c_new = jax.nn.sigmoid(f_) * c + jax.nn.sigmoid(i_) * jnp.tanh(g_)
    h_new = jax.nn.sigmoid(o_) * jnp.tanh(c_new)
    h_out = mt * h_new + (1.0 - mt) * h           # emulate packed sequence
    c_out = mt * c_new + (1.0 - mt) * c
    return (h_out, c_out), h_out * mt             # zero-padded like pad_packed

  h0 = jnp.zeros((2, Bn, Hn), x.dtype)
  c0 = jnp.zeros((2, Bn, Hn), x.dtype)
  _, ys = lax.scan(step, (h0, c0), (xs, mm))       # (T, 2, B, H)
  fwd = jnp.swapaxes(ys[:, 0], 0, 1)
  bwd = jnp.swapaxes(ys[:, 1][::-1], 0, 1)
  return jnp.concatenate([fwd, bwd], axis=-1)      # (B, T, 2H)


def parser_forward_eval(params, word, upos, pretrained, word_mask):
  """Eval-mode forward of Parser (nlpcc=False, char disabled, dropout=identity)."""
  valid = jnp.logical_not(word_mask)                       # True at real tokens
  # --- embeddings (order matches torch: pretrained, word, upos) ---
  pre = params['pretrained_emb'][pretrained] @ params['trans_pretrained'].T
  we = params['word_emb'][word]
  pe = params['upos_emb'][upos]
  x = jnp.concatenate([pre, we, pe], axis=-1).astype(F32)  # (B, T, INPUT_SIZE)
  # --- recurrent encoder (see TODO(synk) above) ---
  lstm_out = bilstm(x, valid, params['lstm'])              # (B, T, 2*HIDDEN)
  # --- fused scorers + combine (single tiled Pallas call, bf16 label-major) --
  vf = valid.astype(F32)
  sem_label_major = fused_parser_scorer_pallas(
      lstm_out, *fused_scorer_args(params['unlabeled'], params['deprel']),
      vf[:, :, None], vf[:, None, :])                      # (B, C, T, T) bf16
  # PyTorch output layout/dtype; production consumers should take the kernel's
  # label-major bf16 tensor directly and skip this HBM transpose + upcast.
  semgraph_probs = jnp.transpose(sem_label_major, (0, 2, 3, 1)).astype(F32)
  loss = jnp.float32(0.0)
  return loss, semgraph_probs, lstm_out


# ============================== reference (check) ============================

def reference_biaffine(x, p):
  h1 = jax.nn.relu(x @ p['w1'].T + p['b1'])
  h2 = jax.nn.relu(x @ p['w2'].T + p['b2'])
  ones = jnp.ones(h1.shape[:-1] + (1,), h1.dtype)
  h1a = jnp.concatenate([h1, ones], -1)
  h2a = jnp.concatenate([h2, ones], -1)
  return jnp.einsum('bip,pqo,bjq->bijo', h1a, p['W'], h2a) + p['bias']


# ================================= params ====================================

def init_params(key):
  ks = iter(jax.random.split(key, 32))
  def nrm(shape, s=0.1):
    return (jax.random.normal(next(ks), shape, dtype=F32) * s)

  def emb(vocab, dim):
    e = nrm((vocab, dim))
    return e.at[0].set(0.0)                 # padding_idx=0

  def biaffine(in_dim, hid, out):
    return dict(w1=nrm((hid, in_dim)), b1=nrm((hid,)),
                w2=nrm((hid, in_dim)), b2=nrm((hid,)),
                W=nrm((hid + 1, hid + 1, out)), bias=nrm((out,)))

  lstm = dict(
      Wih_f=nrm((4 * HIDDEN, INPUT_SIZE)), Whh_f=nrm((4 * HIDDEN, HIDDEN)),
      bih_f=nrm((4 * HIDDEN,)), bhh_f=nrm((4 * HIDDEN,)),
      Wih_b=nrm((4 * HIDDEN, INPUT_SIZE)), Whh_b=nrm((4 * HIDDEN, HIDDEN)),
      bih_b=nrm((4 * HIDDEN,)), bhh_b=nrm((4 * HIDDEN,)))

  return dict(
      word_emb=emb(WORD_VOCAB, WORD_EMB),
      upos_emb=emb(UPOS_VOCAB, TAG_EMB),
      pretrained_emb=emb(PRETRAIN_VOCAB, PRETRAIN_DIM),
      trans_pretrained=nrm((TRANSFORMED, PRETRAIN_DIM)),
      lstm=lstm,
      unlabeled=biaffine(LSTM_OUT, BIAFF_HID, 1),
      deprel=biaffine(LSTM_OUT, BIAFF_HID, GRAPH_VOCAB))


# ================================== main =====================================

if __name__ == "__main__":
  key = jax.random.PRNGKey(0)
  params = init_params(key)

  k1, k2, k3 = jax.random.split(jax.random.PRNGKey(1), 3)
  sentlens = jnp.array([T, 5], dtype=jnp.int32)
  pos = jnp.arange(T)[None, :]
  valid = pos < sentlens[:, None]                              # (B, T) bool
  word_mask = jnp.logical_not(valid)                           # True at pads

  word = jnp.where(valid, jax.random.randint(k1, (B, T), 1, WORD_VOCAB), 0)
  upos = jnp.where(valid, jax.random.randint(k2, (B, T), 1, UPOS_VOCAB), 0)
  pretrained = jnp.where(valid, jax.random.randint(k3, (B, T), 1, PRETRAIN_VOCAB), 0)

  fwd = jax.jit(lambda w, u, p, m: parser_forward_eval(params, w, u, p, m))
  loss, semgraph_probs, lstm_out = fwd(word, upos, pretrained, word_mask)
  jax.block_until_ready(semgraph_probs)

  # --- validate the fused Pallas path against a pure-JAX f32 reference ------
  # Tolerance 2e-2: kernel uses bf16 MXU operands, bf16 output storage and
  # approx (EUP) reciprocals; reference is full f32.
  with jax.default_matmul_precision('float32'):
    un_ref = reference_biaffine(lstm_out, params['unlabeled'])[..., 0]   # (B,T,T)
    dep_ref = reference_biaffine(lstm_out, params['deprel'])             # (B,T,T,C)
    vf = valid.astype(F32)
    w = vf[:, :, None] * vf[:, None, :]
    ref_sem = (jax.nn.sigmoid(un_ref)[..., None]
               * jax.nn.softmax(dep_ref, axis=-1) * w[..., None])
  np.testing.assert_allclose(np.asarray(semgraph_probs), np.asarray(ref_sem),
                             rtol=2e-2, atol=2e-2)
  assert semgraph_probs.shape == (B, T, T, GRAPH_VOCAB)
  assert float(loss) == 0.0

  print("KERNEL_OK")
</pallas_src>

<mosaic_0001>
module attributes {stable_mosaic.version = 11 : i64} {
  func.func @_parser_scorer_kernel(%arg0: i32, %arg1: i32, %arg2: i32, %arg3: memref<1x8x32xf32, #tpu.memory_space<vmem>>, %arg4: memref<1x8x32xf32, #tpu.memory_space<vmem>>, %arg5: memref<32x256xbf16, #tpu.memory_space<vmem>>, %arg6: memref<1x256xf32, #tpu.memory_space<vmem>>, %arg7: memref<32x256xbf16, #tpu.memory_space<vmem>>, %arg8: memref<1x256xf32, #tpu.memory_space<vmem>>, %arg9: memref<128x128xbf16, #tpu.memory_space<vmem>>, %arg10: memref<896x128xbf16, #tpu.memory_space<vmem>>, %arg11: memref<1x8x1xf32, #tpu.memory_space<vmem>>, %arg12: memref<1x1x8xf32, #tpu.memory_space<vmem>>, %arg13: memref<1x7x8x8xbf16, #tpu.memory_space<vmem>>, %arg14: memref<128x8xbf16, #tpu.memory_space<vmem>>, %arg15: memref<7x128x8xbf16, #tpu.memory_space<vmem>>, %arg16: memref<7x8x8xf32, #tpu.memory_space<vmem>>) attributes {dimension_semantics = [#tpu.dimension_semantics<parallel>, #tpu.dimension_semantics<parallel>, #tpu.dimension_semantics<arbitrary>], iteration_bounds = array<i64: 2, 1, 1>, scalar_prefetch = 0 : i64, scratch_operands = 3 : i64, tpu.core_type = #tpu.core_type<tc>, window_params = [{transform_indices = @transform_0, window_bounds = array<i64: 1, 8, 32>}, {transform_indices = @transform_1, window_bounds = array<i64: 1, 8, 32>}, {pipeline_mode = #tpu.pipeline_mode<synchronous>, transform_indices = @transform_2, window_bounds = array<i64: 32, 256>}, {pipeline_mode = #tpu.pipeline_mode<synchronous>, transform_indices = @transform_3, window_bounds = array<i64: 1, 256>}, {pipeline_mode = #tpu.pipeline_mode<synchronous>, transform_indices = @transform_4, window_bounds = array<i64: 32, 256>}, {pipeline_mode = #tpu.pipeline_mode<synchronous>, transform_indices = @transform_5, window_bounds = array<i64: 1, 256>}, {pipeline_mode = #tpu.pipeline_mode<synchronous>, transform_indices = @transform_6, window_bounds = array<i64: 128, 128>}, {pipeline_mode = #tpu.pipeline_mode<synchronous>, transform_indices = @transform_7, window_bounds = array<i64: 896, 128>}, {transform_indices = @transform_8, window_bounds = array<i64: 1, 8, 1>}, {transform_indices = @transform_9, window_bounds = array<i64: 1, 1, 8>}, {transform_indices = @transform_10, window_bounds = array<i64: 1, 7, 8, 8>}]} {
    %c0_i32 = arith.constant 0 : i32
    %0 = arith.cmpi eq, %arg2, %c0_i32 : i32
    %1 = arith.extui %0 : i1 to i32
    %c0_i32_0 = arith.constant 0 : i32
    %2 = arith.cmpi ne, %1, %c0_i32_0 : i32
    scf.if %2 {
      %c0_64 = arith.constant 0 : index
      %c0_65 = arith.constant 0 : index
      %c0_66 = arith.constant 0 : index
      %105 = vector.load %arg4[%c0_64, %c0_65, %c0_66] : memref<1x8x32xf32, #tpu.memory_space<vmem>>, vector<1x8x32xf32>
      %106 = vector.shape_cast %105 : vector<1x8x32xf32> to vector<8x32xf32>
      %107 = arith.truncf %106 : vector<8x32xf32> to vector<8x32xbf16>
      %c0_67 = arith.constant 0 : index
      %c0_68 = arith.constant 0 : index
      %108 = vector.load %arg7[%c0_67, %c0_68] : memref<32x256xbf16, #tpu.memory_space<vmem>>, vector<32x256xbf16>
      %cst_69 = arith.constant dense<0.000000e+00> : vector<8x256xf32>
      %109 = tpu.matmul %107, %108, %cst_69 {dimension_numbers = #tpu.dot_dimension_numbers<[1], [0], [0], [1], [0, 0, 1, 1], [], []>} : vector<8x32xbf16>, vector<32x256xbf16>, vector<8x256xf32> -> vector<8x256xf32>
      %c0_70 = arith.constant 0 : index
      %c0_71 = arith.constant 0 : index
      %110 = vector.load %arg8[%c0_70, %c0_71] : memref<1x256xf32, #tpu.memory_space<vmem>>, vector<1x256xf32>
      %111 = vector.broadcast %110 : vector<1x256xf32> to vector<8x256xf32>
      %112 = arith.addf %109, %111 : vector<8x256xf32>
      %cst_72 = arith.constant 0.000000e+00 : f32
      %113 = vector.broadcast %cst_72 : f32 to vector<8x256xf32>
      %114 = arith.maximumf %112, %113 : vector<8x256xf32>
      %115 = vector.extract_strided_slice %114 {offsets = [0, 0], sizes = [8, 128], strides = [1, 1]} : vector<8x256xf32> to vector<8x128xf32>
      %116 = arith.truncf %115 : vector<8x128xf32> to vector<8x128xbf16>
      %117 = vector.extract_strided_slice %114 {offsets = [0, 128], sizes = [8, 128], strides = [1, 1]} : vector<8x256xf32> to vector<8x128xf32>
      %118 = arith.truncf %117 : vector<8x128xf32> to vector<8x128xbf16>
      %c0_73 = arith.constant 0 : index
      %c0_74 = arith.constant 0 : index
      %119 = vector.load %arg9[%c0_73, %c0_74] : memref<128x128xbf16, #tpu.memory_space<vmem>>, vector<128x128xbf16>
      %cst_75 = arith.constant dense<0.000000e+00> : vector<128x8xf32>
      %120 = tpu.matmul %119, %116, %cst_75 {dimension_numbers = #tpu.dot_dimension_numbers<[1], [1], [0], [0], [0, 0, 1, 0], [], []>} : vector<128x128xbf16>, vector<8x128xbf16>, vector<128x8xf32> -> vector<128x8xf32>
      %121 = arith.truncf %120 : vector<128x8xf32> to vector<128x8xbf16>
      %c0_76 = arith.constant 0 : index
      %c0_77 = arith.constant 0 : index
      %122 = vector.load %arg14[%c0_76, %c0_77] : memref<128x8xbf16, #tpu.memory_space<vmem>>, vector<128x8xbf16>
      tpu.vector_store %arg14[%c0_76, %c0_77], %121 {strides = array<i32>} : memref<128x8xbf16, #tpu.memory_space<vmem>>, vector<128x8xbf16>,
      %c0_78 = arith.constant 0 : index
      %c0_79 = arith.constant 0 : index
      %123 = vector.load %arg10[%c0_78, %c0_79] : memref<896x128xbf16, #tpu.memory_space<vmem>>, vector<896x128xbf16>
      %cst_80 = arith.constant dense<0.000000e+00> : vector<896x8xf32>
      %124 = tpu.matmul %123, %118, %cst_80 {dimension_numbers = #tpu.dot_dimension_numbers<[1], [1], [0], [0], [0, 0, 1, 0], [], []>} : vector<896x128xbf16>, vector<8x128xbf16>, vector<896x8xf32> -> vector<896x8xf32>
      %125 = vector.shape_cast %124 : vector<896x8xf32> to vector<7x128x8xf32>
      %126 = arith.truncf %125 : vector<7x128x8xf32> to vector<7x128x8xbf16>
      %c0_81 = arith.constant 0 : index
      %c0_82 = arith.constant 0 : index
      %c0_83 = arith.constant 0 : index
      %127 = vector.load %arg15[%c0_81, %c0_82, %c0_83] : memref<7x128x8xbf16, #tpu.memory_space<vmem>>, vector<7x128x8xbf16>
      tpu.vector_store %arg15[%c0_81, %c0_82, %c0_83], %126 {strides = array<i32>} : memref<7x128x8xbf16, #tpu.memory_space<vmem>>, vector<7x128x8xbf16>,
    } else {
    }
    %c0 = arith.constant 0 : index
    %c0_1 = arith.constant 0 : index
    %c0_2 = arith.constant 0 : index
    %3 = vector.load %arg3[%c0, %c0_1, %c0_2] : memref<1x8x32xf32, #tpu.memory_space<vmem>>, vector<1x8x32xf32>
    %4 = vector.shape_cast %3 : vector<1x8x32xf32> to vector<8x32xf32>
    %5 = arith.truncf %4 : vector<8x32xf32> to vector<8x32xbf16>
    %c0_3 = arith.constant 0 : index
    %c0_4 = arith.constant 0 : index
    %6 = vector.load %arg5[%c0_3, %c0_4] : memref<32x256xbf16, #tpu.memory_space<vmem>>, vector<32x256xbf16>
    %cst = arith.constant dense<0.000000e+00> : vector<8x256xf32>
    %7 = tpu.matmul %5, %6, %cst {dimension_numbers = #tpu.dot_dimension_numbers<[1], [0], [0], [1], [0, 0, 1, 1], [], []>} : vector<8x32xbf16>, vector<32x256xbf16>, vector<8x256xf32> -> vector<8x256xf32>
    %c0_5 = arith.constant 0 : index
    %c0_6 = arith.constant 0 : index
    %8 = vector.load %arg6[%c0_5, %c0_6] : memref<1x256xf32, #tpu.memory_space<vmem>>, vector<1x256xf32>
    %9 = vector.broadcast %8 : vector<1x256xf32> to vector<8x256xf32>
    %10 = arith.addf %7, %9 : vector<8x256xf32>
    %cst_7 = arith.constant 0.000000e+00 : f32
    %11 = vector.broadcast %cst_7 : f32 to vector<8x256xf32>
    %12 = arith.maximumf %10, %11 : vector<8x256xf32>
    %13 = vector.extract_strided_slice %12 {offsets = [0, 0], sizes = [8, 128], strides = [1, 1]} : vector<8x256xf32> to vector<8x128xf32>
    %14 = arith.truncf %13 : vector<8x128xf32> to vector<8x128xbf16>
    %15 = vector.extract_strided_slice %12 {offsets = [0, 128], sizes = [8, 128], strides = [1, 1]} : vector<8x256xf32> to vector<8x128xf32>
    %16 = arith.truncf %15 : vector<8x128xf32> to vector<8x128xbf16>
    %c0_8 = arith.constant 0 : index
    %c0_9 = arith.constant 0 : index
    %17 = vector.load %arg14[%c0_8, %c0_9] : memref<128x8xbf16, #tpu.memory_space<vmem>>, vector<128x8xbf16>
    %cst_10 = arith.constant dense<0.000000e+00> : vector<8x8xf32>
    %18 = tpu.matmul %14, %17, %cst_10 {dimension_numbers = #tpu.dot_dimension_numbers<[1], [0], [0], [1], [0, 0, 1, 1], [], []>} : vector<8x128xbf16>, vector<128x8xbf16>, vector<8x8xf32> -> vector<8x8xf32>
    %c0_11 = arith.constant 0 : index
    %c0_12 = arith.constant 0 : index
    %c0_13 = arith.constant 0 : index
    %19 = vector.load %arg11[%c0_11, %c0_12, %c0_13] : memref<1x8x1xf32, #tpu.memory_space<vmem>>, vector<1x8x1xf32>
    %20 = vector.shape_cast %19 : vector<1x8x1xf32> to vector<8x1xf32>
    %c0_14 = arith.constant 0 : index
    %c0_15 = arith.constant 0 : index
    %c0_16 = arith.constant 0 : index
    %21 = vector.load %arg12[%c0_14, %c0_15, %c0_16] : memref<1x1x8xf32, #tpu.memory_space<vmem>>, vector<1x1x8xf32>
    %22 = vector.shape_cast %21 : vector<1x1x8xf32> to vector<1x8xf32>
    %23 = vector.broadcast %20 : vector<8x1xf32> to vector<8x8xf32>
    %24 = vector.broadcast %22 : vector<1x8xf32> to vector<8x8xf32>
    %25 = arith.mulf %23, %24 : vector<8x8xf32>
    %cst_17 = arith.constant 0.000000e+00 : f32
    %26 = vector.broadcast %cst_17 : f32 to vector<8x8xf32>
    %27 = arith.subf %26, %18 : vector<8x8xf32>
    %28 = math.exp %27 : vector<8x8xf32>
    %cst_18 = arith.constant 1.000000e+00 : f32
    %29 = vector.broadcast %cst_18 : f32 to vector<8x8xf32>
    %30 = arith.addf %29, %28 : vector<8x8xf32>
    %31 = tpu.reciprocal %30 {approx = true} : vector<8x8xf32> -> vector<8x8xf32>
    %32 = arith.mulf %25, %31 : vector<8x8xf32>
    %c0_i32_19 = arith.constant 0 : i32
    %33 = arith.index_cast %c0_i32_19 : i32 to index
    %c0_20 = arith.constant 0 : index
    %c0_21 = arith.constant 0 : index
    %34 = vector.load %arg15[%33, %c0_20, %c0_21] : memref<7x128x8xbf16, #tpu.memory_space<vmem>>, vector<1x128x8xbf16>
    %35 = vector.shape_cast %34 : vector<1x128x8xbf16> to vector<128x8xbf16>
    %cst_22 = arith.constant dense<0.000000e+00> : vector<8x8xf32>
    %36 = tpu.matmul %16, %35, %cst_22 {dimension_numbers = #tpu.dot_dimension_numbers<[1], [0], [0], [1], [0, 0, 1, 1], [], []>} : vector<8x128xbf16>, vector<128x8xbf16>, vector<8x8xf32> -> vector<8x8xf32>
    %37 = arith.index_cast %c0_i32_19 : i32 to index
    %c0_23 = arith.constant 0 : index
    %c0_24 = arith.constant 0 : index
    %38 = vector.load %arg16[%37, %c0_23, %c0_24] : memref<7x8x8xf32, #tpu.memory_space<vmem>>, vector<1x8x8xf32>
    %39 = vector.shape_cast %38 : vector<1x8x8xf32> to vector<8x8xf32>
    %40 = vector.shape_cast %36 : vector<8x8xf32> to vector<1x8x8xf32>
    tpu.vector_store %arg16[%37, %c0_23, %c0_24], %40 {strides = array<i32>} : memref<7x8x8xf32, #tpu.memory_space<vmem>>, vector<1x8x8xf32>,
    %c1_i32 = arith.constant 1 : i32
    %41 = arith.index_cast %c1_i32 : i32 to index
    %c0_25 = arith.constant 0 : index
    %c0_26 = arith.constant 0 : index
    %42 = vector.load %arg15[%41, %c0_25, %c0_26] : memref<7x128x8xbf16, #tpu.memory_space<vmem>>, vector<1x128x8xbf16>
    %43 = vector.shape_cast %42 : vector<1x128x8xbf16> to vector<128x8xbf16>
    %cst_27 = arith.constant dense<0.000000e+00> : vector<8x8xf32>
    %44 = tpu.matmul %16, %43, %cst_27 {dimension_numbers = #tpu.dot_dimension_numbers<[1], [0], [0], [1], [0, 0, 1, 1], [], []>} : vector<8x128xbf16>, vector<128x8xbf16>, vector<8x8xf32> -> vector<8x8xf32>
    %45 = arith.index_cast %c1_i32 : i32 to index
    %c0_28 = arith.constant 0 : index
    %c0_29 = arith.constant 0 : index
    %46 = vector.load %arg16[%45, %c0_28, %c0_29] : memref<7x8x8xf32, #tpu.memory_space<vmem>>, vector<1x8x8xf32>
    %47 = vector.shape_cast %46 : vector<1x8x8xf32> to vector<8x8xf32>
    %48 = vector.shape_cast %44 : vector<8x8xf32> to vector<1x8x8xf32>
    tpu.vector_store %arg16[%45, %c0_28, %c0_29], %48 {strides = array<i32>} : memref<7x8x8xf32, #tpu.memory_space<vmem>>, vector<1x8x8xf32>,
    %c2_i32 = arith.constant 2 : i32
    %49 = arith.index_cast %c2_i32 : i32 to index
    %c0_30 = arith.constant 0 : index
    %c0_31 = arith.constant 0 : index
    %50 = vector.load %arg15[%49, %c0_30, %c0_31] : memref<7x128x8xbf16, #tpu.memory_space<vmem>>, vector<1x128x8xbf16>
    %51 = vector.shape_cast %50 : vector<1x128x8xbf16> to vector<128x8xbf16>
    %cst_32 = arith.constant dense<0.000000e+00> : vector<8x8xf32>
    %52 = tpu.matmul %16, %51, %cst_32 {dimension_numbers = #tpu.dot_dimension_numbers<[1], [0], [0], [1], [0, 0, 1, 1], [], []>} : vector<8x128xbf16>, vector<128x8xbf16>, vector<8x8xf32> -> vector<8x8xf32>
    %53 = arith.index_cast %c2_i32 : i32 to index
    %c0_33 = arith.constant 0 : index
    %c0_34 = arith.constant 0 : index
    %54 = vector.load %arg16[%53, %c0_33, %c0_34] : memref<7x8x8xf32, #tpu.memory_space<vmem>>, vector<1x8x8xf32>
    %55 = vector.shape_cast %54 : vector<1x8x8xf32> to vector<8x8xf32>
    %56 = vector.shape_cast %52 : vector<8x8xf32> to vector<1x8x8xf32>
    tpu.vector_store %arg16[%53, %c0_33, %c0_34], %56 {strides = array<i32>} : memref<7x8x8xf32, #tpu.memory_space<vmem>>, vector<1x8x8xf32>,
    %c3_i32 = arith.constant 3 : i32
    %57 = arith.index_cast %c3_i32 : i32 to index
    %c0_35 = arith.constant 0 : index
    %c0_36 = arith.constant 0 : index
    %58 = vector.load %arg15[%57, %c0_35, %c0_36] : memref<7x128x8xbf16, #tpu.memory_space<vmem>>, vector<1x128x8xbf16>
    %59 = vector.shape_cast %58 : vector<1x128x8xbf16> to vector<128x8xbf16>
    %cst_37 = arith.constant dense<0.000000e+00> : vector<8x8xf32>
    %60 = tpu.matmul %16, %59, %cst_37 {dimension_numbers = #tpu.dot_dimension_numbers<[1], [0], [0], [1], [0, 0, 1, 1], [], []>} : vector<8x128xbf16>, vector<128x8xbf16>, vector<8x8xf32> -> vector<8x8xf32>
    %61 = arith.index_cast %c3_i32 : i32 to index
    %c0_38 = arith.constant 0 : index
    %c0_39 = arith.constant 0 : index
    %62 = vector.load %arg16[%61, %c0_38, %c0_39] : memref<7x8x8xf32, #tpu.memory_space<vmem>>, vector<1x8x8xf32>
    %63 = vector.shape_cast %62 : vector<1x8x8xf32> to vector<8x8xf32>
    %64 = vector.shape_cast %60 : vector<8x8xf32> to vector<1x8x8xf32>
    tpu.vector_store %arg16[%61, %c0_38, %c0_39], %64 {strides = array<i32>} : memref<7x8x8xf32, #tpu.memory_space<vmem>>, vector<1x8x8xf32>,
    %c4_i32 = arith.constant 4 : i32
    %65 = arith.index_cast %c4_i32 : i32 to index
    %c0_40 = arith.constant 0 : index
    %c0_41 = arith.constant 0 : index
    %66 = vector.load %arg15[%65, %c0_40, %c0_41] : memref<7x128x8xbf16, #tpu.memory_space<vmem>>, vector<1x128x8xbf16>
    %67 = vector.shape_cast %66 : vector<1x128x8xbf16> to vector<128x8xbf16>
    %cst_42 = arith.constant dense<0.000000e+00> : vector<8x8xf32>
    %68 = tpu.matmul %16, %67, %cst_42 {dimension_numbers = #tpu.dot_dimension_numbers<[1], [0], [0], [1], [0, 0, 1, 1], [], []>} : vector<8x128xbf16>, vector<128x8xbf16>, vector<8x8xf32> -> vector<8x8xf32>
    %69 = arith.index_cast %c4_i32 : i32 to index
    %c0_43 = arith.constant 0 : index
    %c0_44 = arith.constant 0 : index
    %70 = vector.load %arg16[%69, %c0_43, %c0_44] : memref<7x8x8xf32, #tpu.memory_space<vmem>>, vector<1x8x8xf32>
    %71 = vector.shape_cast %70 : vector<1x8x8xf32> to vector<8x8xf32>
    %72 = vector.shape_cast %68 : vector<8x8xf32> to vector<1x8x8xf32>
    tpu.vector_store %arg16[%69, %c0_43, %c0_44], %72 {strides = array<i32>} : memref<7x8x8xf32, #tpu.memory_space<vmem>>, vector<1x8x8xf32>,
    %c5_i32 = arith.constant 5 : i32
    %73 = arith.index_cast %c5_i32 : i32 to index
    %c0_45 = arith.constant 0 : index
    %c0_46 = arith.constant 0 : index
    %74 = vector.load %arg15[%73, %c0_45, %c0_46] : memref<7x128x8xbf16, #tpu.memory_space<vmem>>, vector<1x128x8xbf16>
    %75 = vector.shape_cast %74 : vector<1x128x8xbf16> to vector<128x8xbf16>
    %cst_47 = arith.constant dense<0.000000e+00> : vector<8x8xf32>
    %76 = tpu.matmul %16, %75, %cst_47 {dimension_numbers = #tpu.dot_dimension_numbers<[1], [0], [0], [1], [0, 0, 1, 1], [], []>} : vector<8x128xbf16>, vector<128x8xbf16>, vector<8x8xf32> -> vector<8x8xf32>
    %77 = arith.index_cast %c5_i32 : i32 to index
    %c0_48 = arith.constant 0 : index
    %c0_49 = arith.constant 0 : index
    %78 = vector.load %arg16[%77, %c0_48, %c0_49] : memref<7x8x8xf32, #tpu.memory_space<vmem>>, vector<1x8x8xf32>
    %79 = vector.shape_cast %78 : vector<1x8x8xf32> to vector<8x8xf32>
    %80 = vector.shape_cast %76 : vector<8x8xf32> to vector<1x8x8xf32>
    tpu.vector_store %arg16[%77, %c0_48, %c0_49], %80 {strides = array<i32>} : memref<7x8x8xf32, #tpu.memory_space<vmem>>, vector<1x8x8xf32>,
    %c6_i32 = arith.constant 6 : i32
    %81 = arith.index_cast %c6_i32 : i32 to index
    %c0_50 = arith.constant 0 : index
    %c0_51 = arith.constant 0 : index
    %82 = vector.load %arg15[%81, %c0_50, %c0_51] : memref<7x128x8xbf16, #tpu.memory_space<vmem>>, vector<1x128x8xbf16>
    %83 = vector.shape_cast %82 : vector<1x128x8xbf16> to vector<128x8xbf16>
    %cst_52 = arith.constant dense<0.000000e+00> : vector<8x8xf32>
    %84 = tpu.matmul %16, %83, %cst_52 {dimension_numbers = #tpu.dot_dimension_numbers<[1], [0], [0], [1], [0, 0, 1, 1], [], []>} : vector<8x128xbf16>, vector<128x8xbf16>, vector<8x8xf32> -> vector<8x8xf32>
    %85 = arith.index_cast %c6_i32 : i32 to index
    %c0_53 = arith.constant 0 : index
    %c0_54 = arith.constant 0 : index
    %86 = vector.load %arg16[%85, %c0_53, %c0_54] : memref<7x8x8xf32, #tpu.memory_space<vmem>>, vector<1x8x8xf32>
    %87 = vector.shape_cast %86 : vector<1x8x8xf32> to vector<8x8xf32>
    %88 = vector.shape_cast %84 : vector<8x8xf32> to vector<1x8x8xf32>
    tpu.vector_store %arg16[%85, %c0_53, %c0_54], %88 {strides = array<i32>} : memref<7x8x8xf32, #tpu.memory_space<vmem>>, vector<1x8x8xf32>,
    %c7_i32 = arith.constant 7 : i32
    %c0_55 = arith.constant 0 : index
    %c0_56 = arith.constant 0 : index
    %c0_57 = arith.constant 0 : index
    %89 = vector.load %arg16[%c0_55, %c0_56, %c0_57] : memref<7x8x8xf32, #tpu.memory_space<vmem>>, vector<7x8x8xf32>
    %cst_58 = arith.constant dense<0xFF800000> : vector<8x8xf32>
    %90 = vector.multi_reduction <maximumf>, %89, %cst_58 [0] : vector<7x8x8xf32> to vector<8x8xf32>
    %91 = vector.shape_cast %90 : vector<8x8xf32> to vector<1x8x8xf32>
    %92 = vector.broadcast %91 : vector<1x8x8xf32> to vector<7x8x8xf32>
    %93 = arith.subf %89, %92 : vector<7x8x8xf32>
    %94 = math.exp %93 : vector<7x8x8xf32>
    %cst_59 = arith.constant dense<0.000000e+00> : vector<8x8xf32>
    %95 = vector.multi_reduction <add>, %94, %cst_59 [0] : vector<7x8x8xf32> to vector<8x8xf32>
    %96 = tpu.reciprocal %95 {approx = true} : vector<8x8xf32> -> vector<8x8xf32>
    %97 = arith.mulf %32, %96 : vector<8x8xf32>
    %98 = vector.shape_cast %97 : vector<8x8xf32> to vector<1x8x8xf32>
    %99 = vector.broadcast %98 : vector<1x8x8xf32> to vector<7x8x8xf32>
    %100 = arith.mulf %99, %94 : vector<7x8x8xf32>
    %101 = arith.truncf %100 : vector<7x8x8xf32> to vector<7x8x8xbf16>
    %c0_60 = arith.constant 0 : index
    %c0_61 = arith.constant 0 : index
    %c0_62 = arith.constant 0 : index
    %c0_63 = arith.constant 0 : index
    %102 = vector.load %arg13[%c0_60, %c0_61, %c0_62, %c0_63] : memref<1x7x8x8xbf16, #tpu.memory_space<vmem>>, vector<1x7x8x8xbf16>
    %103 = vector.shape_cast %102 : vector<1x7x8x8xbf16> to vector<7x8x8xbf16>
    %104 = vector.shape_cast %101 : vector<7x8x8xbf16> to vector<1x7x8x8xbf16>
    tpu.vector_store %arg13[%c0_60, %c0_61, %c0_62, %c0_63], %104 {strides = array<i32>} : memref<1x7x8x8xbf16, #tpu.memory_space<vmem>>, vector<1x7x8x8xbf16>,
    return
  }
  func.func @transform_0(%arg0: i32, %arg1: i32, %arg2: i32) -> (i32, i32, i32) {
    %c0_i32 = arith.constant 0 : i32
    %c0_i32_0 = arith.constant 0 : i32
    return %arg0, %arg2, %c0_i32 : i32, i32, i32
  }
  func.func @transform_1(%arg0: i32, %arg1: i32, %arg2: i32) -> (i32, i32, i32) {
    %c0_i32 = arith.constant 0 : i32
    %c0_i32_0 = arith.constant 0 : i32
    return %arg0, %arg1, %c0_i32 : i32, i32, i32
  }
  func.func @transform_2(%arg0: i32, %arg1: i32, %arg2: i32) -> (i32, i32) {
    %c0_i32 = arith.constant 0 : i32
    %c0_i32_0 = arith.constant 0 : i32
    %c0_i32_1 = arith.constant 0 : i32
    return %c0_i32, %c0_i32_0 : i32, i32
  }
  func.func @transform_3(%arg0: i32, %arg1: i32, %arg2: i32) -> (i32, i32) {
    %c0_i32 = arith.constant 0 : i32
    %c0_i32_0 = arith.constant 0 : i32
    %c0_i32_1 = arith.constant 0 : i32
    return %c0_i32, %c0_i32_0 : i32, i32
  }
  func.func @transform_4(%arg0: i32, %arg1: i32, %arg2: i32) -> (i32, i32) {
    %c0_i32 = arith.constant 0 : i32
    %c0_i32_0 = arith.constant 0 : i32
    %c0_i32_1 = arith.constant 0 : i32
    return %c0_i32, %c0_i32_0 : i32, i32
  }
  func.func @transform_5(%arg0: i32, %arg1: i32, %arg2: i32) -> (i32, i32) {
    %c0_i32 = arith.constant 0 : i32
    %c0_i32_0 = arith.constant 0 : i32
    %c0_i32_1 = arith.constant 0 : i32
    return %c0_i32, %c0_i32_0 : i32, i32
  }
  func.func @transform_6(%arg0: i32, %arg1: i32, %arg2: i32) -> (i32, i32) {
    %c0_i32 = arith.constant 0 : i32
    %c0_i32_0 = arith.constant 0 : i32
    %c0_i32_1 = arith.constant 0 : i32
    return %c0_i32, %c0_i32_0 : i32, i32
  }
  func.func @transform_7(%arg0: i32, %arg1: i32, %arg2: i32) -> (i32, i32) {
    %c0_i32 = arith.constant 0 : i32
    %c0_i32_0 = arith.constant 0 : i32
    %c0_i32_1 = arith.constant 0 : i32
    return %c0_i32, %c0_i32_0 : i32, i32
  }
  func.func @transform_8(%arg0: i32, %arg1: i32, %arg2: i32) -> (i32, i32, i32) {
    %c0_i32 = arith.constant 0 : i32
    %c0_i32_0 = arith.constant 0 : i32
    return %arg0, %arg2, %c0_i32 : i32, i32, i32
  }
  func.func @transform_9(%arg0: i32, %arg1: i32, %arg2: i32) -> (i32, i32, i32) {
    %c0_i32 = arith.constant 0 : i32
    %c0_i32_0 = arith.constant 0 : i32
    return %arg0, %c0_i32, %arg1 : i32, i32, i32
  }
  func.func @transform_10(%arg0: i32, %arg1: i32, %arg2: i32) -> (i32, i32, i32, i32) {
    %c0_i32 = arith.constant 0 : i32
    %c0_i32_0 = arith.constant 0 : i32
    return %arg0, %c0_i32, %arg2, %arg1 : i32, i32, i32, i32
  }
}

</mosaic_0001>

<llo_original>
// kernel: reverse
$region0: #{reverse}
  %s0 = inlined_call_operand.vmem [shape: f32[8,2], index: 0, kind: input, shape index: {}]
  %s1 = inlined_call_operand.vmem [shape: f32[8,2], index: 1, kind: output, shape index: {}]
  %v2 = vlaneseq
  %v3 = vsub.s32 7, %v2
  %4 = vset.pattern.permute.xlu0 %v3
  $region1: #{reverse} parent=0
    #allocation0 [shape = 'u8[4096]{0}', space=vmem, size = 0x1000, scoped, tag = 'operand span for operand 0']
    #allocation1 [shape = 'u8[1024]{0}', space=vmem, size = 0x400, scoped, tag = 'packed  for operand 0']
    #allocation2 [shape = 'u8[4096]{0}', space=vmem, size = 0x1000, scoped, tag = 'operand span for operand 1']
    #allocation3 [shape = 'u8[1024]{0}', space=vmem, size = 0x400, scoped, tag = 'packed  for operand 1']
    // Predicated region
    $region2: #{reverse} parent=1 // pred_check
      _
    $region3: #{reverse} parent=1 // pred_check_branch
      %6 = sbr.rel (0) target = $region5
    $region4: #{reverse} parent=1 // pred_region
      // Predicated region
      $region6: #{reverse} parent=4 // pred_check
        _
      $region7: #{reverse} parent=4 // pred_check_branch
        %8 = sbr.rel target = $region9
      $region8: #{reverse} parent=4 // pred_region
        // Predicated region
        $region21: #{reverse} parent=8 // pred_check
          _
        $region22: #{reverse} parent=8 // pred_check_branch
          %24 = sbr.rel (0) target = $region24
        $region23: #{reverse} parent=8 // pred_region
          %s26 = ssub.s32 4, 1
          loop: start=0, step=1, limit=1
          $region25: #{reverse} parent=23 // loop_pre_header
            _
          $region26: #{reverse} parent=23 // loop_header
            %s28 = sphi 0, %s32
            %p29 = scmp.ge.s32.totalorder %s28, 1
            %s33 = sphi %s0, %s0
            %s34 = sphi [#allocation1], [#allocation1]
          $region27: #{reverse} parent=23 // loop_header_branch
            %31 = sbr.rel (%p29) target = $region31
          $region28: #{reverse} parent=23 // loop_body
            %v35 = vld [vmem:[%s33] sm:%s26]
            %36 = vst [vmem:[%s34] sm:%s26] %v35
          $region29: #{reverse} parent=23 // loop_footer
            %s32 = sadd.s32 1, %s28
          $region30: #{reverse} parent=23 // loop_footer_branch
            %27 = sbr.rel target = $region26
          $region31: #{reverse} parent=23 // loop_exit
            _
        $region24: #{reverse} parent=8 // pred_fallthru
          _
      $region9: #{reverse} parent=4 // pred_fallthru
        _
      // Predicated region
      $region10: #{reverse} parent=4 // pred_check
        _
      $region11: #{reverse} parent=4 // pred_check_branch
        %10 = sbr.rel (0) target = $region13
      $region12: #{reverse} parent=4 // pred_region
        %s12 = ssub.s32 4, 1
        loop: start=0, step=1, limit=1
        $region14: #{reverse} parent=12 // loop_pre_header
          _
        $region15: #{reverse} parent=12 // loop_header
          %s14 = sphi 0, %s18
          %p15 = scmp.ge.s32.totalorder %s14, 1
          %s19 = sphi %s0, %s0
          %s20 = sphi [#allocation1], [#allocation1]
        $region16: #{reverse} parent=12 // loop_header_branch
          %17 = sbr.rel (%p15) target = $region20
        $region17: #{reverse} parent=12 // loop_body
          %v21 = vld [vmem:[%s19] sm:%s12]
          %22 = vst [vmem:[%s20] sm:%s12] %v21
        $region18: #{reverse} parent=12 // loop_footer
          %s18 = sadd.s32 1, %s14
        $region19: #{reverse} parent=12 // loop_footer_branch
          %13 = sbr.rel target = $region15
        $region20: #{reverse} parent=12 // loop_exit
          _
      $region13: #{reverse} parent=4 // pred_fallthru
        _
    $region5: #{reverse} parent=1 // pred_fallthru
      _
    %37 = vnop
    %s39 = ssub.s32 4, 1
    %v40 = vld [vmem:[#allocation1] sm:%s39]
    %41 = vst [vmem:[#allocation0] sm:%s39] %v40
    %v42 = vld [vmem:[#allocation0] sm:$0xff]
    %43 = vperm.xlu0 %4, %v42
    %v44 = vpop.permute.xlu0 %43
    %45 = vst [vmem:[#allocation2] sm:$0xff] %v44
    %s47 = ssub.s32 4, 1
    %v48 = vld [vmem:[#allocation2] sm:%s47]
    %s50 = ssub.s32 4, 1
    %51 = vst [vmem:[#allocation3] sm:%s50] %v48
    // Predicated region
    $region32: #{reverse} parent=1 // pred_check
      _
    $region33: #{reverse} parent=1 // pred_check_branch
      %53 = sbr.rel (0) target = $region35
    $region34: #{reverse} parent=1 // pred_region
      // Predicated region
      $region36: #{reverse} parent=34 // pred_check
        _
      $region37: #{reverse} parent=34 // pred_check_branch
        %55 = sbr.rel target = $region39
      $region38: #{reverse} parent=34 // pred_region
        // Predicated region
        $region51: #{reverse} parent=38 // pred_check
          _
        $region52: #{reverse} parent=38 // pred_check_branch
          %71 = sbr.rel (0) target = $region54
        $region53: #{reverse} parent=38 // pred_region
          %s73 = ssub.s32 4, 1
          loop: start=0, step=1, limit=1
          $region55: #{reverse} parent=53 // loop_pre_header
            _
          $region56: #{reverse} parent=53 // loop_header
            %s75 = sphi 0, %s79
            %p76 = scmp.ge.s32.totalorder %s75, 1
            %s80 = sphi [#allocation3], [#allocation3]
            %s81 = sphi %s1, %s1
          $region57: #{reverse} parent=53 // loop_header_branch
            %78 = sbr.rel (%p76) target = $region61
          $region58: #{reverse} parent=53 // loop_body
            %v82 = vld [vmem:[%s80] sm:%s73]
            %83 = vst [vmem:[%s81] sm:%s73] %v82
          $region59: #{reverse} parent=53 // loop_footer
            %s79 = sadd.s32 1, %s75
          $region60: #{reverse} parent=53 // loop_footer_branch
            %74 = sbr.rel target = $region56
          $region61: #{reverse} parent=53 // loop_exit
            _
        $region54: #{reverse} parent=38 // pred_fallthru
          _
      $region39: #{reverse} parent=34 // pred_fallthru
        _
      // Predicated region
      $region40: #{reverse} parent=34 // pred_check
        _
      $region41: #{reverse} parent=34 // pred_check_branch
        %57 = sbr.rel (0) target = $region43
      $region42: #{reverse} parent=34 // pred_region
        %s59 = ssub.s32 4, 1
        loop: start=0, step=1, limit=1
        $region44: #{reverse} parent=42 // loop_pre_header
          _
        $region45: #{reverse} parent=42 // loop_header
          %s61 = sphi 0, %s65
          %p62 = scmp.ge.s32.totalorder %s61, 1
          %s66 = sphi [#allocation3], [#allocation3]
          %s67 = sphi %s1, %s1
        $region46: #{reverse} parent=42 // loop_header_branch
          %64 = sbr.rel (%p62) target = $region50
        $region47: #{reverse} parent=42 // loop_body
          %v68 = vld [vmem:[%s66] sm:%s59]
          %69 = vst [vmem:[%s67] sm:%s59] %v68
        $region48: #{reverse} parent=42 // loop_footer
          %s65 = sadd.s32 1, %s61
        $region49: #{reverse} parent=42 // loop_footer_branch
          %60 = sbr.rel target = $region45
        $region50: #{reverse} parent=42 // loop_exit
          _
      $region43: #{reverse} parent=34 // pred_fallthru
        _
    $region35: #{reverse} parent=1 // pred_fallthru
      _
    %84 = vnop

// kernel: custom-call.8
$region0: #{custom-call.8}
  %s0 = inlined_call_operand.vmem [shape: f32[8,2,2,16], index: 0, kind: output, shape index: {}]

// kernel: custom-call
$region0: #{custom-call}
  %s0 = inlined_call_operand.vmem [shape: f32[2,2,16], index: 0, kind: output, shape index: {}]

// kernel: _lambda_.1
$region0: #{_lambda_.1}
  #allocation0 [shape = 'u32[]', space=smem, size = 0x4, offset = 0x4, fixed_abs, tag = 'smem constant byte address 0x4 - core index']
  #allocation1 [shape = 'u32[72,128]{1,0:T(1,128)}', space=vmem, size = 0x9000, scoped, tag = 'internal scratch']
  #allocation2 [shape = 'bf16[128,8]{1,0:T(8,128)(2,1)}', space=vmem, size = 0x8000, scoped, tag = 'scratch operand']
  #allocation3 [shape = 'bf16[7,128,8]{2,1,0:T(8,128)(2,1)}', space=vmem, size = 0x38000, scoped, tag = 'scratch operand']
  #allocation4 [shape = 'f32[7,8,8]{2,1,0:T(8,128)}', space=vmem, size = 0x7000, scoped, tag = 'scratch operand']
  %s0 = inlined_call_operand.vmem [shape: f32[2,8,32], index: 0, kind: input, shape index: {}, may-alias: {0,1}]
  %s1 = inlined_call_operand.vmem [shape: f32[2,8,32], index: 1, kind: input, shape index: {}, may-alias: {0,1}]
  %s2 = inlined_call_operand.vmem [shape: bf16[32,256], index: 2, kind: input, shape index: {}]
  %s3 = inlined_call_operand.vmem [shape: f32[1,256], index: 3, kind: input, shape index: {}]
  %s4 = inlined_call_operand.vmem [shape: bf16[32,256], index: 4, kind: input, shape index: {}]
  %s5 = inlined_call_operand.vmem [shape: f32[1,256], index: 5, kind: input, shape index: {}]
  %s6 = inlined_call_operand.vmem [shape: bf16[128,128], index: 6, kind: input, shape index: {}]
  %s7 = inlined_call_operand.hbm [shape: bf16[896,128], index: 7, kind: input, shape index: {}]
  %s8 = inlined_call_operand.vmem [shape: f32[2,8,1], index: 8, kind: input, shape index: {}]
  %s9 = inlined_call_operand.vmem [shape: f32[2,1,8], index: 9, kind: input, shape index: {}]
  %s10 = inlined_call_operand.vmem [shape: bf16[2,7,8,8], index: 10, kind: output, shape index: {}]
  %s11 = sld [smem:[#allocation0]]
  $region81: #{_lambda_.1} parent=0
    _
  %s13 = ssub.s32 1, %s11
  %s14 = scalar_select 0, %s13, %s11
  $region1: #{_lambda_.1} parent=0
    #allocation5 [shape = 'u8[229376]{0}', space=vmem, size = 0x38000, scoped, tag = 'input window, operand 7, single buffered']
    #allocation6 [shape = 's32[2]{0}', space=sflag, size = 0x8, scoped, tag = 'scoped memory for _lambda_.1']
    %15 = vsyncpa [#allocation6], 0
    loop: start=0, step=1, limit=4
    $region2: #{_lambda_.1} parent=1 // loop_pre_header
      _
    $region3: #{_lambda_.1} parent=1 // loop_header
      %s17 = sphi 0, %s21
      %p18 = scmp.ge.s32.totalorder %s17, 4
      %s24 = sphi 0, %s43
      %s25 = sphi 0, %s39
      %s26 = sphi 0, %s35
      %s27 = sphi 0, %s24
      %s28 = sphi 0, %s25
      %s29 = sphi 0, %s26
      %s30 = sphi 0, %s27
      %s31 = sphi 0, %s28
      %s32 = sphi 0, %s29
      %s48 = sphi 0, %s50
      %s51 = sphi 0, %s48
      %s52 = sphi 0, %s51
      %s68 = sphi 0, %s52
      %s76 = sphi 0, %s78
      %s79 = sphi 0, %s76
      %s80 = sphi 0, %s79
      %s96 = sphi 0, %s80
      %s100 = sphi 0, %s100
      %s102 = sphi 0, %s100
      %s103 = sphi 0, %s102
      %s117 = sphi 0, %s103
      %s121 = sphi 0, %s121
      %s123 = sphi 0, %s121
      %s124 = sphi 0, %s123
      %s138 = sphi 0, %s124
      %s142 = sphi 0, %s142
      %s144 = sphi 0, %s142
      %s145 = sphi 0, %s144
      %s159 = sphi 0, %s145
      %s163 = sphi 0, %s163
      %s165 = sphi 0, %s163
      %s166 = sphi 0, %s165
      %s180 = sphi 0, %s166
      %s184 = sphi 0, %s184
      %s186 = sphi 0, %s184
      %s187 = sphi 0, %s186
      %s201 = sphi 0, %s187
      %s205 = sphi 0, %s205
      %s207 = sphi 0, %s205
      %s208 = sphi 0, %s207
      %s222 = sphi 0, %s208
      %s230 = sphi 0, %s232
      %s233 = sphi 0, %s230
      %s234 = sphi 0, %s233
      %s250 = sphi 0, %s234
      %s258 = sphi 0, %s260
      %s261 = sphi 0, %s258
      %s262 = sphi 0, %s261
      %s278 = sphi 0, %s262
      %s288 = sphi 0, %s290
      %s291 = sphi 0, %s288
      %s292 = sphi 0, %s291
      %s308 = sphi 0, %s292
    $region4: #{_lambda_.1} parent=1 // loop_header_branch
      %20 = sbr.rel (%p18) target = $region8
    $region5: #{_lambda_.1} parent=1 // loop_body
      %s22 = ssub.s32 %s17, 1
      %s23 = ssub.s32 %s17, 2
      %s33 = sadd.s32 1, %s26
      %p34 = scmp.ge.s32.totalorder %s33, 1
      %s35 = scalar_select %p34, 0, %s33
      %s36 = sadd.s32 1, %s25
      %s37 = scalar_select %p34, %s36, %s25
      %p38 = scmp.ge.s32.totalorder %s37, 1
      %s39 = scalar_select %p38, 0, %s37
      %s40 = sadd.s32 1, %s24
      %s41 = scalar_select %p38, %s40, %s24
      %p42 = scmp.ge.s32.totalorder %s41, 2
      %s43 = scalar_select %p42, 0, %s41
      %s44 = ssub.s32 %s24, %s43
      %s45 = ssub.s32 %s26, %s35
      %s46 = sor.u32 %s44, %s45
      %p47 = scmp.eq.s32.totalorder %s46, 0
      %s49 = sadd.s32 %s48, 1
      %s50 = scalar_select %p47, %s48, %s49
      %p53 = pneg %p47
      %p54 = scmp.eq.s32.totalorder %s17, 1
      %p55 = por %p53, %p54
      %p56 = scmp.ne.s32.totalorder %s48, %s51
      %p57 = scmp.eq.s32.totalorder %s17, 0
      %p58 = por %p56, %p57
      %p59 = scmp.ne.s32.totalorder %s48, %s51
      %p60 = scmp.eq.s32.totalorder %s22, 1
      %p61 = por %p59, %p60
      %p62 = scmp.ne.s32.totalorder %s51, %s52
      %p63 = scmp.eq.s32.totalorder %s22, 0
      %p64 = por %p62, %p63
      %p65 = scmp.ne.s32.totalorder %s51, %s52
      %p66 = scmp.eq.s32.totalorder %s23, 1
      %p67 = por %p65, %p66
      %p69 = scmp.ne.s32.totalorder %s52, %s68
      %p70 = scmp.eq.s32.totalorder %s23, 0
      %p71 = por %p69, %p70
      %s72 = ssub.s32 %s24, %s43
      %s73 = ssub.s32 %s25, %s39
      %s74 = sor.u32 %s72, %s73
      %p75 = scmp.eq.s32.totalorder %s74, 0
      %s77 = sadd.s32 %s76, 1
      %s78 = scalar_select %p75, %s76, %s77
      %p81 = pneg %p75
      %p82 = scmp.eq.s32.totalorder %s17, 1
      %p83 = por %p81, %p82
      %p84 = scmp.ne.s32.totalorder %s76, %s79
      %p85 = scmp.eq.s32.totalorder %s17, 0
      %p86 = por %p84, %p85
      %p87 = scmp.ne.s32.totalorder %s76, %s79
      %p88 = scmp.eq.s32.totalorder %s22, 1
      %p89 = por %p87, %p88
      %p90 = scmp.ne.s32.totalorder %s79, %s80
      %p91 = scmp.eq.s32.totalorder %s22, 0
      %p92 = por %p90, %p91
      %p93 = scmp.ne.s32.totalorder %s79, %s80
      %p94 = scmp.eq.s32.totalorder %s23, 1
      %p95 = por %p93, %p94
      %p97 = scmp.ne.s32.totalorder %s80, %s96
      %p98 = scmp.eq.s32.totalorder %s23, 0
      %p99 = por %p97, %p98
      %s101 = sadd.s32 %s100, 1
      %p104 = scmp.eq.s32.totalorder %s17, 1
      %p105 = scmp.ne.s32.totalorder %s100, %s102
      %p106 = scmp.eq.s32.totalorder %s17, 0
      %p107 = por %p105, %p106
      %p108 = scmp.ne.s32.totalorder %s100, %s102
      %p109 = scmp.eq.s32.totalorder %s22, 1
      %p110 = por %p108, %p109
      %p111 = scmp.ne.s32.totalorder %s102, %s103
      %p112 = scmp.eq.s32.totalorder %s22, 0
      %p113 = por %p111, %p112
      %p114 = scmp.ne.s32.totalorder %s102, %s103
      %p115 = scmp.eq.s32.totalorder %s23, 1
      %p116 = por %p114, %p115
      %p118 = scmp.ne.s32.totalorder %s103, %s117
      %p119 = scmp.eq.s32.totalorder %s23, 0
      %p120 = por %p118, %p119
      %s122 = sadd.s32 %s121, 1
      %p125 = scmp.eq.s32.totalorder %s17, 1
      %p126 = scmp.ne.s32.totalorder %s121, %s123
      %p127 = scmp.eq.s32.totalorder %s17, 0
      %p128 = por %p126, %p127
      %p129 = scmp.ne.s32.totalorder %s121, %s123
      %p130 = scmp.eq.s32.totalorder %s22, 1
      %p131 = por %p129, %p130
      %p132 = scmp.ne.s32.totalorder %s123, %s124
      %p133 = scmp.eq.s32.totalorder %s22, 0
      %p134 = por %p132, %p133
      %p135 = scmp.ne.s32.totalorder %s123, %s124
      %p136 = scmp.eq.s32.totalorder %s23, 1
      %p137 = por %p135, %p136
      %p139 = scmp.ne.s32.totalorder %s124, %s138
      %p140 = scmp.eq.s32.totalorder %s23, 0
      %p141 = por %p139, %p140
      %s143 = sadd.s32 %s142, 1
      %p146 = scmp.eq.s32.totalorder %s17, 1
      %p147 = scmp.ne.s32.totalorder %s142, %s144
      %p148 = scmp.eq.s32.totalorder %s17, 0
      %p149 = por %p147, %p148
      %p150 = scmp.ne.s32.totalorder %s142, %s144
      %p151 = scmp.eq.s32.totalorder %s22, 1
      %p152 = por %p150, %p151
      %p153 = scmp.ne.s32.totalorder %s144, %s145
      %p154 = scmp.eq.s32.totalorder %s22, 0
      %p155 = por %p153, %p154
      %p156 = scmp.ne.s32.totalorder %s144, %s145
      %p157 = scmp.eq.s32.totalorder %s23, 1
      %p158 = por %p156, %p157
      %p160 = scmp.ne.s32.totalorder %s145, %s159
      %p161 = scmp.eq.s32.totalorder %s23, 0
      %p162 = por %p160, %p161
      %s164 = sadd.s32 %s163, 1
      %p167 = scmp.eq.s32.totalorder %s17, 1
      %p168 = scmp.ne.s32.totalorder %s163, %s165
      %p169 = scmp.eq.s32.totalorder %s17, 0
      %p170 = por %p168, %p169
      %p171 = scmp.ne.s32.totalorder %s163, %s165
      %p172 = scmp.eq.s32.totalorder %s22, 1
      %p173 = por %p171, %p172
      %p174 = scmp.ne.s32.totalorder %s165, %s166
      %p175 = scmp.eq.s32.totalorder %s22, 0
      %p176 = por %p174, %p175
      %p177 = scmp.ne.s32.totalorder %s165, %s166
      %p178 = scmp.eq.s32.totalorder %s23, 1
      %p179 = por %p177, %p178
      %p181 = scmp.ne.s32.totalorder %s166, %s180
      %p182 = scmp.eq.s32.totalorder %s23, 0
      %p183 = por %p181, %p182
      %s185 = sadd.s32 %s184, 1
      %p188 = scmp.eq.s32.totalorder %s17, 1
      %p189 = scmp.ne.s32.totalorder %s184, %s186
      %p190 = scmp.eq.s32.totalorder %s17, 0
      %p191 = por %p189, %p190
      %p192 = scmp.ne.s32.totalorder %s184, %s186
      %p193 = scmp.eq.s32.totalorder %s22, 1
      %p194 = por %p192, %p193
      %p195 = scmp.ne.s32.totalorder %s186, %s187
      %p196 = scmp.eq.s32.totalorder %s22, 0
      %p197 = por %p195, %p196
      %p198 = scmp.ne.s32.totalorder %s186, %s187
      %p199 = scmp.eq.s32.totalorder %s23, 1
      %p200 = por %p198, %p199
      %p202 = scmp.ne.s32.totalorder %s187, %s201
      %p203 = scmp.eq.s32.totalorder %s23, 0
      %p204 = por %p202, %p203
      %s206 = sadd.s32 %s205, 1
      %p209 = scmp.eq.s32.totalorder %s17, 1
      %p210 = scmp.ne.s32.totalorder %s205, %s207
      %p211 = scmp.eq.s32.totalorder %s17, 0
      %p212 = por %p210, %p211
      %p213 = scmp.ne.s32.totalorder %s205, %s207
      %p214 = scmp.eq.s32.totalorder %s22, 1
      %p215 = por %p213, %p214
      %p216 = scmp.ne.s32.totalorder %s207, %s208
      %p217 = scmp.eq.s32.totalorder %s22, 0
      %p218 = por %p216, %p217
      %p219 = scmp.ne.s32.totalorder %s207, %s208
      %p220 = scmp.eq.s32.totalorder %s23, 1
      %p221 = por %p219, %p220
      %p223 = scmp.ne.s32.totalorder %s208, %s222
      %p224 = scmp.eq.s32.totalorder %s23, 0
      %p225 = por %p223, %p224
      %s226 = ssub.s32 %s24, %s43
      %s227 = ssub.s32 %s26, %s35
      %s228 = sor.u32 %s226, %s227
      %p229 = scmp.eq.s32.totalorder %s228, 0
      %s231 = sadd.s32 %s230, 1
      %s232 = scalar_select %p229, %s230, %s231
      %p235 = pneg %p229
      %p236 = scmp.eq.s32.totalorder %s17, 1
      %p237 = por %p235, %p236
      %p238 = scmp.ne.s32.totalorder %s230, %s233
      %p239 = scmp.eq.s32.totalorder %s17, 0
      %p240 = por %p238, %p239
      %p241 = scmp.ne.s32.totalorder %s230, %s233
      %p242 = scmp.eq.s32.totalorder %s22, 1
      %p243 = por %p241, %p242
      %p244 = scmp.ne.s32.totalorder %s233, %s234
      %p245 = scmp.eq.s32.totalorder %s22, 0
      %p246 = por %p244, %p245
      %p247 = scmp.ne.s32.totalorder %s233, %s234
      %p248 = scmp.eq.s32.totalorder %s23, 1
      %p249 = por %p247, %p248
      %p251 = scmp.ne.s32.totalorder %s234, %s250
      %p252 = scmp.eq.s32.totalorder %s23, 0
      %p253 = por %p251, %p252
      %s254 = ssub.s32 %s24, %s43
      %s255 = ssub.s32 %s25, %s39
      %s256 = sor.u32 %s254, %s255
      %p257 = scmp.eq.s32.totalorder %s256, 0
      %s259 = sadd.s32 %s258, 1
      %s260 = scalar_select %p257, %s258, %s259
      %p263 = pneg %p257
      %p264 = scmp.eq.s32.totalorder %s17, 1
      %p265 = por %p263, %p264
      %p266 = scmp.ne.s32.totalorder %s258, %s261
      %p267 = scmp.eq.s32.totalorder %s17, 0
      %p268 = por %p266, %p267
      %p269 = scmp.ne.s32.totalorder %s258, %s261
      %p270 = scmp.eq.s32.totalorder %s22, 1
      %p271 = por %p269, %p270
      %p272 = scmp.ne.s32.totalorder %s261, %s262
      %p273 = scmp.eq.s32.totalorder %s22, 0
      %p274 = por %p272, %p273
      %p275 = scmp.ne.s32.totalorder %s261, %s262
      %p276 = scmp.eq.s32.totalorder %s23, 1
      %p277 = por %p275, %p276
      %p279 = scmp.ne.s32.totalorder %s262, %s278
      %p280 = scmp.eq.s32.totalorder %s23, 0
      %p281 = por %p279, %p280
      %s282 = ssub.s32 %s24, %s43
      %s283 = ssub.s32 %s26, %s35
      %s284 = sor.u32 %s282, %s283
      %s285 = ssub.s32 %s25, %s39
      %s286 = sor.u32 %s284, %s285
      %p287 = scmp.eq.s32.totalorder %s286, 0
      %s289 = sadd.s32 %s288, 1
      %s290 = scalar_select %p287, %s288, %s289
      %p293 = pneg %p287
      %p294 = scmp.eq.s32.totalorder %s17, 1
      %p295 = por %p293, %p294
      %p296 = scmp.ne.s32.totalorder %s288, %s291
      %p297 = scmp.eq.s32.totalorder %s17, 0
      %p298 = por %p296, %p297
      %p299 = scmp.ne.s32.totalorder %s288, %s291
      %p300 = scmp.eq.s32.totalorder %s22, 1
      %p301 = por %p299, %p300
      %p302 = scmp.ne.s32.totalorder %s291, %s292
      %p303 = scmp.eq.s32.totalorder %s22, 0
      %p304 = por %p302, %p303
      %p305 = scmp.ne.s32.totalorder %s291, %s292
      %p306 = scmp.eq.s32.totalorder %s23, 1
      %p307 = por %p305, %p306
      %p309 = scmp.ne.s32.totalorder %s292, %s308
      %p310 = scmp.eq.s32.totalorder %s23, 0
      %p311 = por %p309, %p310
      %p312 = scmp.le.s32.totalorder 1, %s17
      %p313 = scmp.lt.s32.totalorder %s17, 3
      %p314 = pnand %p312, %p313
      %p315 = pneg %p314
      // Predicated region
      $region9: #{_lambda_.1} parent=5 // pred_check
        _
      $region10: #{_lambda_.1} parent=5 // pred_check_branch
        %317 = sbr.rel (%p314) target = $region12
      $region11: #{_lambda_.1} parent=5 // pred_region
        %s318 = ssub.s32 %s17, 1
        // Predicated region
        $region13: #{_lambda_.1} parent=11 // pred_check
          %p319 = pneg %p113
        $region14: #{_lambda_.1} parent=11 // pred_check_branch
          %321 = sbr.rel (%p319) target = $region16
        $region15: #{_lambda_.1} parent=11 // pred_region
          _
        $region16: #{_lambda_.1} parent=11 // pred_fallthru
          _
        // Predicated region
        $region17: #{_lambda_.1} parent=11 // pred_check
          %p322 = pneg %p134
        $region18: #{_lambda_.1} parent=11 // pred_check_branch
          %324 = sbr.rel (%p322) target = $region20
        $region19: #{_lambda_.1} parent=11 // pred_region
          _
        $region20: #{_lambda_.1} parent=11 // pred_fallthru
          _
        // Predicated region
        $region21: #{_lambda_.1} parent=11 // pred_check
          %p325 = pneg %p155
        $region22: #{_lambda_.1} parent=11 // pred_check_branch
          %327 = sbr.rel (%p325) target = $region24
        $region23: #{_lambda_.1} parent=11 // pred_region
          _
        $region24: #{_lambda_.1} parent=11 // pred_fallthru
          _
        // Predicated region
        $region25: #{_lambda_.1} parent=11 // pred_check
          %p328 = pneg %p176
        $region26: #{_lambda_.1} parent=11 // pred_check_branch
          %330 = sbr.rel (%p328) target = $region28
        $region27: #{_lambda_.1} parent=11 // pred_region
          _
        $region28: #{_lambda_.1} parent=11 // pred_fallthru
          _
        // Predicated region
        $region29: #{_lambda_.1} parent=11 // pred_check
          %p331 = pneg %p197
        $region30: #{_lambda_.1} parent=11 // pred_check_branch
          %333 = sbr.rel (%p331) target = $region32
        $region31: #{_lambda_.1} parent=11 // pred_region
          _
        $region32: #{_lambda_.1} parent=11 // pred_fallthru
          _
        // Predicated region
        $region33: #{_lambda_.1} parent=11 // pred_check
          %p334 = pneg %p218
        $region34: #{_lambda_.1} parent=11 // pred_check_branch
          %336 = sbr.rel (%p334) target = $region36
        $region35: #{_lambda_.1} parent=11 // pred_region
          %338 = vsyncadd [#allocation6], 0
          %s339 = sshll.u32 %s7, 4
          %s340 = int_to_ptr.hbm [resolvable:$true] %s339
          %s341 = sshll.u32 [#allocation5], 4
          %s342 = int_to_ptr.vmem [resolvable:$true] %s341
          %347 = dma.hbm_to_vmem [thread:$0]  %s340, 7168, %s342, [#allocation6], 64, 64, 4
        $region36: #{_lambda_.1} parent=11 // pred_fallthru
          _
      $region12: #{_lambda_.1} parent=5 // pred_fallthru
        _
      %p348 = scmp.lt.s32.totalorder %s17, 2
      // Predicated region
      $region37: #{_lambda_.1} parent=5 // pred_check
        %p349 = pneg %p348
      $region38: #{_lambda_.1} parent=5 // pred_check_branch
        %351 = sbr.rel (%p349) target = $region40
      $region39: #{_lambda_.1} parent=5 // pred_region
        // Predicated region
        $region41: #{_lambda_.1} parent=39 // pred_check
          %p352 = pneg %p58
        $region42: #{_lambda_.1} parent=39 // pred_check_branch
          %354 = sbr.rel (%p352) target = $region44
        $region43: #{_lambda_.1} parent=39 // pred_region
          %p355 = scmp.lt.s32.totalorder %s24, 1
          %s356 = scalar_select %p355, %s24, 1
          %p357 = scmp.lt.s32.totalorder %s26, 0
          %s358 = scalar_select %p357, %s26, 0
          %s359 = sadd.s32 %s358, %s356
          %s360 = smul.addr %s359, 8
          %s361 = scalar_lea.vmem %s0, %s360
        $region44: #{_lambda_.1} parent=39 // pred_fallthru
          _
        // Predicated region
        $region45: #{_lambda_.1} parent=39 // pred_check
          %p362 = pneg %p86
        $region46: #{_lambda_.1} parent=39 // pred_check_branch
          %364 = sbr.rel (%p362) target = $region48
        $region47: #{_lambda_.1} parent=39 // pred_region
          %p365 = scmp.lt.s32.totalorder %s24, 1
          %s366 = scalar_select %p365, %s24, 1
          %p367 = scmp.lt.s32.totalorder %s25, 0
          %s368 = scalar_select %p367, %s25, 0
          %s369 = sadd.s32 %s368, %s366
          %s370 = smul.addr %s369, 8
          %s371 = scalar_lea.vmem %s1, %s370
        $region48: #{_lambda_.1} parent=39 // pred_fallthru
          _
        // Predicated region
        $region49: #{_lambda_.1} parent=39 // pred_check
          %p372 = pneg %p240
        $region50: #{_lambda_.1} parent=39 // pred_check_branch
          %374 = sbr.rel (%p372) target = $region52
        $region51: #{_lambda_.1} parent=39 // pred_region
          %p375 = scmp.lt.s32.totalorder %s24, 1
          %s376 = scalar_select %p375, %s24, 1
          %p377 = scmp.lt.s32.totalorder %s26, 0
          %s378 = scalar_select %p377, %s26, 0
          %s379 = sadd.s32 %s378, %s376
          %s380 = smul.addr %s379, 8
          %s381 = scalar_lea.vmem %s8, %s380
        $region52: #{_lambda_.1} parent=39 // pred_fallthru
          _
        // Predicated region
        $region53: #{_lambda_.1} parent=39 // pred_check
          %p382 = pneg %p268
        $region54: #{_lambda_.1} parent=39 // pred_check_branch
          %384 = sbr.rel (%p382) target = $region56
        $region55: #{_lambda_.1} parent=39 // pred_region
          %p385 = scmp.lt.s32.totalorder %s24, 1
          %s386 = scalar_select %p385, %s24, 1
          %p387 = scmp.lt.s32.totalorder %s25, 0
          %s388 = scalar_select %p387, %s25, 0
          %s389 = sadd.s32 %s388, %s386
          %s390 = scalar_lea.vmem %s9, %s389
        $region56: #{_lambda_.1} parent=39 // pred_fallthru
          _
      $region40: #{_lambda_.1} parent=5 // pred_fallthru
        _
      %p391 = scmp.le.s32.totalorder 1, %s17
      %p392 = scmp.lt.s32.totalorder %s17, 3
      %p393 = pnand %p391, %p392
      %p394 = pneg %p393
      // Predicated region
      $region57: #{_lambda_.1} parent=5 // pred_check
        _
      $region58: #{_lambda_.1} parent=5 // pred_check_branch
        %396 = sbr.rel (%p393) target = $region60
      $region59: #{_lambda_.1} parent=5 // pred_region
        %s397 = ssub.s32 %s17, 1
        // Predicated region
        $region61: #{_lambda_.1} parent=59 // pred_check
          %p398 = pneg %p218
        $region62: #{_lambda_.1} parent=59 // pred_check_branch
          %400 = sbr.rel (%p398) target = $region64
        $region63: #{_lambda_.1} parent=59 // pred_region
          %402 = dma.done [#allocation6], 7168
        $region64: #{_lambda_.1} parent=59 // pred_fallthru
          _
        %p403 = scmp.lt.s32.totalorder %s27, 1
        %s404 = scalar_select %p403, %s27, 1
        %p405 = scmp.lt.s32.totalorder %s29, 0
        %s406 = scalar_select %p405, %s29, 0
        %s407 = sadd.s32 %s406, %s404
        %s408 = smul.addr %s407, 8
        %s409 = scalar_lea.vmem %s0, %s408
        %p410 = pneg %p64
        %p411 = pneg %p61
        %p412 = scmp.lt.s32.totalorder %s27, 1
        %s413 = scalar_select %p412, %s27, 1
        %p414 = scmp.lt.s32.totalorder %s28, 0
        %s415 = scalar_select %p414, %s28, 0
        %s416 = sadd.s32 %s415, %s413
        %s417 = smul.addr %s416, 8
        %s418 = scalar_lea.vmem %s1, %s417
        %p419 = pneg %p92
        %p420 = pneg %p89
        %p421 = pneg %p113
        %p422 = pneg %p110
        %p423 = pneg %p134
        %p424 = pneg %p131
        %p425 = pneg %p155
        %p426 = pneg %p152
        %p427 = pneg %p176
        %p428 = pneg %p173
        %p429 = pneg %p197
        %p430 = pneg %p194
        %p431 = pneg %p218
        %p432 = pneg %p215
        %p433 = scmp.lt.s32.totalorder %s27, 1
        %s434 = scalar_select %p433, %s27, 1
        %p435 = scmp.lt.s32.totalorder %s29, 0
        %s436 = scalar_select %p435, %s29, 0
        %s437 = sadd.s32 %s436, %s434
        %s438 = smul.addr %s437, 8
        %s439 = scalar_lea.vmem %s8, %s438
        %p440 = pneg %p246
        %p441 = pneg %p243
        %p442 = scmp.lt.s32.totalorder %s27, 1
        %s443 = scalar_select %p442, %s27, 1
        %p444 = scmp.lt.s32.totalorder %s28, 0
        %s445 = scalar_select %p444, %s28, 0
        %s446 = sadd.s32 %s445, %s443
        %s447 = scalar_lea.vmem %s9, %s446
        %p448 = pneg %p274
        %p449 = pneg %p271
        %p450 = pneg %p304
        %p451 = pneg %p301
        %p452 = scmp.lt.s32.totalorder %s27, 1
        %s453 = scalar_select %p452, %s27, 1
        %p454 = scmp.lt.s32.totalorder %s29, 0
        %s455 = scalar_select %p454, %s29, 0
        %p456 = scmp.lt.s32.totalorder %s28, 0
        %s457 = scalar_select %p456, %s28, 0
        %s458 = sadd.s32 %s457, %s455
        %s459 = smul.addr %s453, 7
        %s460 = sadd.s32 %s458, %s459
        %s461 = smul.addr %s460, 4
        %s462 = scalar_lea.vmem %s10, %s461
        %p463 = scmp.lt.s32.totalorder %s27, 1
        %s464 = scalar_select %p463, %s27, 1
        %p465 = scmp.lt.s32.totalorder %s29, 0
        %s466 = scalar_select %p465, %s29, 0
        %s467 = sadd.s32 %s466, %s464
        %s468 = smul.addr %s467, 8
        %s469 = scalar_lea.vmem %s0, %s468
        %p470 = scmp.lt.s32.totalorder %s27, 1
        %s471 = scalar_select %p470, %s27, 1
        %p472 = scmp.lt.s32.totalorder %s28, 0
        %s473 = scalar_select %p472, %s28, 0
        %s474 = sadd.s32 %s473, %s471
        %s475 = smul.addr %s474, 8
        %s476 = scalar_lea.vmem %s1, %s475
        %p477 = scmp.lt.s32.totalorder %s27, 1
        %s478 = scalar_select %p477, %s27, 1
        %p479 = scmp.lt.s32.totalorder %s29, 0
        %s480 = scalar_select %p479, %s29, 0
        %s481 = sadd.s32 %s480, %s478
        %s482 = smul.addr %s481, 8
        %s483 = scalar_lea.vmem %s8, %s482
        %p484 = scmp.lt.s32.totalorder %s27, 1
        %s485 = scalar_select %p484, %s27, 1
        %p486 = scmp.lt.s32.totalorder %s28, 0
        %s487 = scalar_select %p486, %s28, 0
        %s488 = sadd.s32 %s487, %s485
        %s489 = scalar_lea.vmem %s9, %s488
        %p490 = scmp.lt.s32.totalorder %s27, 1
        %s491 = scalar_select %p490, %s27, 1
        %p492 = scmp.lt.s32.totalorder %s29, 0
        %s493 = scalar_select %p492, %s29, 0
        %p494 = scmp.lt.s32.totalorder %s28, 0
        %s495 = scalar_select %p494, %s28, 0
        %s496 = sadd.s32 %s495, %s493
        %s497 = smul.addr %s491, 7
        %s498 = sadd.s32 %s496, %s497
        %s499 = smul.addr %s498, 4
        %s500 = scalar_lea.vmem %s10, %s499
        %p502 = scmp.eq.s32.totalorder %s29, 0
        // Predicated region
        $region65: #{_lambda_.1} parent=59 // pred_check
          %p503 = pneg %p502
        $region66: #{_lambda_.1} parent=59 // pred_check_branch
          %505 = sbr.rel (%p503) target = $region68
        $region67: #{_lambda_.1} parent=59 // pred_region
          %v506 = vld [vmem:[%s476] sm:$0xff]
          %v507 = vpack.c.bf16 %v506, %v506
          %v508 = vld [vmem:[%s4] sm:$0xff]
          %v509 = vld [vmem:[%s4 + $0x8] sm:$0xff]
          %v510 = vld [vmem:[%s4 + $0x10] sm:$0xff]
          %v511 = vld [vmem:[%s4 + $0x18] sm:$0xff]
          %v512 = vld [vmem:[%s5] sm:$0x3]
          %v514 = vperm.slane %v512, 0
          %v515 = vperm.slane %v512, 1
          %v522 = vunpack.c.l.b16 %v508
          %v523 = vunpack.c.h.b16 %v508
          %v524 = vunpack.c.l.b16 %v509
          %v525 = vunpack.c.h.b16 %v509
          %v526 = vunpack.c.l.b16 %v510
          %v527 = vunpack.c.h.b16 %v510
          %v528 = vunpack.c.l.b16 %v511
          %v529 = vunpack.c.h.b16 %v511
          %v530 = vpack.c.b16 %v524, %v522
          %v531 = vpack.c.b16 %v525, %v523
          %v532 = vpack.c.b16 %v528, %v526
          %v533 = vpack.c.b16 %v529, %v527
          %vm538 = vcmask 261120
          %v540 = vsel %vm538, %v507, 0
          %542 = vmatpush.bf16.msra.mxu0 0
          %543 = vmatpush.bf16.msra.mxu0 0
          %544 = vmatpush.bf16.msra.mxu0 0
          %545 = vmatpush.bf16.msra.mxu0 0
          %546 = vmatpush.bf16.msra.mxu0 0
          %547 = vmatpush.bf16.msra.mxu0 0
          %548 = vmatpush.bf16.msra.mxu0 %v532
          %549 = vmatpush.bf16.msra.mxu0 %v530
          %550 = vmatmul.bf16.gmra.mxu0 %v540
          %v551 = vpop.f32.mrf.mxu0
          %v552 = vadd.f32 %v514, %v551
          %v553 = vpop.f32.mrf.mxu0
          %554 = vdwg.mxu0
          %555 = vmatpush.bf16.msra.mxu0 0
          %556 = vmatpush.bf16.msra.mxu0 0
          %557 = vmatpush.bf16.msra.mxu0 0
          %558 = vmatpush.bf16.msra.mxu0 0
          %559 = vmatpush.bf16.msra.mxu0 0
          %560 = vmatpush.bf16.msra.mxu0 0
          %561 = vmatpush.bf16.msra.mxu0 %v533
          %562 = vmatpush.bf16.msra.mxu0 %v531
          %563 = vmatmul.bf16.gmra.mxu0 %v540
          %v564 = vpop.f32.mrf.mxu0
          %v565 = vadd.f32 %v515, %v564
          %v566 = vpop.f32.mrf.mxu0
          %567 = vdwg.mxu0
          %v568 = vmax.f32 %v552, 0.0
          %v569 = vmax.f32 %v565, 0.0
          %v570 = vpack.c.bf16 %v568, %v568
          %v571 = vpack.c.bf16 %v569, %v569
          %v572 = vld [vmem:[%s6] sm:$0xf]
          %v573 = vld [vmem:[%s6 + $0x4] sm:$0xf]
          %v574 = vld [vmem:[%s6 + $0x8] sm:$0xf]
          %v575 = vld [vmem:[%s6 + $0xc] sm:$0xf]
          %v576 = vld [vmem:[%s6 + $0x10] sm:$0xf]
          %v577 = vld [vmem:[%s6 + $0x14] sm:$0xf]
          %v578 = vld [vmem:[%s6 + $0x18] sm:$0xf]
          %v579 = vld [vmem:[%s6 + $0x1c] sm:$0xf]
          %v580 = vld [vmem:[%s6 + $0x20] sm:$0xf]
          %v581 = vld [vmem:[%s6 + $0x24] sm:$0xf]
          %v582 = vld [vmem:[%s6 + $0x28] sm:$0xf]
          %v583 = vld [vmem:[%s6 + $0x2c] sm:$0xf]
          %v584 = vld [vmem:[%s6 + $0x30] sm:$0xf]
          %v585 = vld [vmem:[%s6 + $0x34] sm:$0xf]
          %v586 = vld [vmem:[%s6 + $0x38] sm:$0xf]
          %v587 = vld [vmem:[%s6 + $0x3c] sm:$0xf]
          %v604 = vunpack.c.l.b16 %v572
          %v605 = vunpack.c.l.b16 %v573
          %v606 = vunpack.c.l.b16 %v574
          %v607 = vunpack.c.l.b16 %v575
          %v608 = vunpack.c.l.b16 %v576
          %v609 = vunpack.c.l.b16 %v577
          %v610 = vunpack.c.l.b16 %v578
          %v611 = vunpack.c.l.b16 %v579
          %v612 = vunpack.c.l.b16 %v580
          %v613 = vunpack.c.l.b16 %v581
          %v614 = vunpack.c.l.b16 %v582
          %v615 = vunpack.c.l.b16 %v583
          %v616 = vunpack.c.l.b16 %v584
          %v617 = vunpack.c.l.b16 %v585
          %v618 = vunpack.c.l.b16 %v586
          %v619 = vunpack.c.l.b16 %v587
          %v620 = vpack.c.b16 %v605, %v604
          %v621 = vpack.c.b16 %v607, %v606
          %v622 = vpack.c.b16 %v609, %v608
          %v623 = vpack.c.b16 %v611, %v610
          %v624 = vpack.c.b16 %v613, %v612
          %v625 = vpack.c.b16 %v615, %v614
          %v626 = vpack.c.b16 %v617, %v616
          %v627 = vpack.c.b16 %v619, %v618
          %636 = vmatpush.bf16.xpose.msra.mxu0 0
          %637 = vmatpush.bf16.xpose.msra.mxu0 0
          %638 = vmatpush.bf16.xpose.msra.mxu0 0
          %639 = vmatpush.bf16.xpose.msra.mxu0 0
          %640 = vmatpush.bf16.xpose.msra.mxu0 0
          %641 = vmatpush.bf16.xpose.msra.mxu0 0
          %642 = vmatpush.bf16.xpose.msra.mxu0 0
          %643 = vmatpush.bf16.xpose.msra.mxu0 %v570
          %644 = vmatmul.bf16.gmra.mxu0 %v620
          %v645 = vpop.f32.mrf.mxu0
          %v646 = vadd.f32 0.0, %v645
          %v647 = vpop.f32.mrf.mxu0
          %v648 = vadd.f32 0.0, %v647
          %649 = vmatmul.bf16.gmra.mxu0 %v621
          %v650 = vpop.f32.mrf.mxu0
          %v651 = vadd.f32 0.0, %v650
          %v652 = vpop.f32.mrf.mxu0
          %v653 = vadd.f32 0.0, %v652
          %654 = vmatmul.bf16.gmra.mxu0 %v622
          %v655 = vpop.f32.mrf.mxu0
          %v656 = vadd.f32 0.0, %v655
          %v657 = vpop.f32.mrf.mxu0
          %v658 = vadd.f32 0.0, %v657
          %659 = vmatmul.bf16.gmra.mxu0 %v623
          %v660 = vpop.f32.mrf.mxu0
          %v661 = vadd.f32 0.0, %v660
          %v662 = vpop.f32.mrf.mxu0
          %v663 = vadd.f32 0.0, %v662
          %664 = vmatmul.bf16.gmra.mxu0 %v624
          %v665 = vpop.f32.mrf.mxu0
          %v666 = vadd.f32 0.0, %v665
          %v667 = vpop.f32.mrf.mxu0
          %v668 = vadd.f32 0.0, %v667
          %669 = vmatmul.bf16.gmra.mxu0 %v625
          %v670 = vpop.f32.mrf.mxu0
          %v671 = vadd.f32 0.0, %v670
          %v672 = vpop.f32.mrf.mxu0
          %v673 = vadd.f32 0.0, %v672
          %674 = vmatmul.bf16.gmra.mxu0 %v626
          %v675 = vpop.f32.mrf.mxu0
          %v676 = vadd.f32 0.0, %v675
          %v677 = vpop.f32.mrf.mxu0
          %v678 = vadd.f32 0.0, %v677
          %679 = vmatmul.bf16.gmra.mxu0 %v627
          %v680 = vpop.f32.mrf.mxu0
          %v681 = vadd.f32 0.0, %v680
          %v682 = vpop.f32.mrf.mxu0
          %v683 = vadd.f32 0.0, %v682
          %684 = vdwg.mxu0
          %v685 = vpack.c.bf16 %v646, %v646
          %v686 = vpack.c.bf16 %v648, %v648
          %v687 = vpack.c.bf16 %v651, %v651
          %v688 = vpack.c.bf16 %v653, %v653
          %v689 = vpack.c.bf16 %v656, %v656
          %v690 = vpack.c.bf16 %v658, %v658
          %v691 = vpack.c.bf16 %v661, %v661
          %v692 = vpack.c.bf16 %v663, %v663
          %v693 = vpack.c.bf16 %v666, %v666
          %v694 = vpack.c.bf16 %v668, %v668
          %v695 = vpack.c.bf16 %v671, %v671
          %v696 = vpack.c.bf16 %v673, %v673
          %v697 = vpack.c.bf16 %v676, %v676
          %v698 = vpack.c.bf16 %v678, %v678
          %v699 = vpack.c.bf16 %v681, %v681
          %v700 = vpack.c.bf16 %v683, %v683
          %vm701 = vcmask 60416
          %702 = vst.msk [vmem:[#allocation2] sm:$0xf] %vm701, %v685
          %703 = vst.msk [vmem:[#allocation2 + $0x4] sm:$0xf] %vm701, %v686
          %704 = vst.msk [vmem:[#allocation2 + $0x8] sm:$0xf] %vm701, %v687
          %705 = vst.msk [vmem:[#allocation2 + $0xc] sm:$0xf] %vm701, %v688
          %706 = vst.msk [vmem:[#allocation2 + $0x10] sm:$0xf] %vm701, %v689
          %707 = vst.msk [vmem:[#allocation2 + $0x14] sm:$0xf] %vm701, %v690
          %708 = vst.msk [vmem:[#allocation2 + $0x18] sm:$0xf] %vm701, %v691
          %709 = vst.msk [vmem:[#allocation2 + $0x1c] sm:$0xf] %vm701, %v692
          %710 = vst.msk [vmem:[#allocation2 + $0x20] sm:$0xf] %vm701, %v693
          %711 = vst.msk [vmem:[#allocation2 + $0x24] sm:$0xf] %vm701, %v694
          %712 = vst.msk [vmem:[#allocation2 + $0x28] sm:$0xf] %vm701, %v695
          %713 = vst.msk [vmem:[#allocation2 + $0x2c] sm:$0xf] %vm701, %v696
          %714 = vst.msk [vmem:[#allocation2 + $0x30] sm:$0xf] %vm701, %v697
          %715 = vst.msk [vmem:[#allocation2 + $0x34] sm:$0xf] %vm701, %v698
          %716 = vst.msk [vmem:[#allocation2 + $0x38] sm:$0xf] %vm701, %v699
          %717 = vst.msk [vmem:[#allocation2 + $0x3c] sm:$0xf] %vm701, %v700
          %v718 = vld [vmem:[#allocation5] sm:$0xf]
          %v719 = vld [vmem:[#allocation5 + $0x4] sm:$0xf]
          %v720 = vld [vmem:[#allocation5 + $0x8] sm:$0xf]
          %v721 = vld [vmem:[#allocation5 + $0xc] sm:$0xf]
          %v722 = vld [vmem:[#allocation5 + $0x10] sm:$0xf]
          %v723 = vld [vmem:[#allocation5 + $0x14] sm:$0xf]
          %v724 = vld [vmem:[#allocation5 + $0x18] sm:$0xf]
          %v725 = vld [vmem:[#allocation5 + $0x1c] sm:$0xf]
          %v726 = vld [vmem:[#allocation5 + $0x20] sm:$0xf]
          %v727 = vld [vmem:[#allocation5 + $0x24] sm:$0xf]
          %v728 = vld [vmem:[#allocation5 + $0x28] sm:$0xf]
          %v729 = vld [vmem:[#allocation5 + $0x2c] sm:$0xf]
          %v730 = vld [vmem:[#allocation5 + $0x30] sm:$0xf]
          %v731 = vld [vmem:[#allocation5 + $0x34] sm:$0xf]
          %v732 = vld [vmem:[#allocation5 + $0x38] sm:$0xf]
          %v733 = vld [vmem:[#allocation5 + $0x3c] sm:$0xf]
          %v734 = vld [vmem:[#allocation5 + $0x40] sm:$0xf]
          %v735 = vld [vmem:[#allocation5 + $0x44] sm:$0xf]
          %v736 = vld [vmem:[#allocation5 + $0x48] sm:$0xf]
          %v737 = vld [vmem:[#allocation5 + $0x4c] sm:$0xf]
          %v738 = vld [vmem:[#allocation5 + $0x50] sm:$0xf]
          %v739 = vld [vmem:[#allocation5 + $0x54] sm:$0xf]
          %v740 = vld [vmem:[#allocation5 + $0x58] sm:$0xf]
          %v741 = vld [vmem:[#allocation5 + $0x5c] sm:$0xf]
          %v742 = vld [vmem:[#allocation5 + $0x60] sm:$0xf]
          %v743 = vld [vmem:[#allocation5 + $0x64] sm:$0xf]
          %v744 = vld [vmem:[#allocation5 + $0x68] sm:$0xf]
          %v745 = vld [vmem:[#allocation5 + $0x6c] sm:$0xf]
          %v746 = vld [vmem:[#allocation5 + $0x70] sm:$0xf]
          %v747 = vld [vmem:[#allocation5 + $0x74] sm:$0xf]
          %v748 = vld [vmem:[#allocation5 + $0x78] sm:$0xf]
          %v749 = vld [vmem:[#allocation5 + $0x7c] sm:$0xf]
          %v750 = vld [vmem:[#allocation5 + $0x80] sm:$0xf]
          %v751 = vld [vmem:[#allocation5 + $0x84] sm:$0xf]
          %v752 = vld [vmem:[#allocation5 + $0x88] sm:$0xf]
          %v753 = vld [vmem:[#allocation5 + $0x8c] sm:$0xf]
          %v754 = vld [vmem:[#allocation5 + $0x90] sm:$0xf]
          %v755 = vld [vmem:[#allocation5 + $0x94] sm:$0xf]
          %v756 = vld [vmem:[#allocation5 + $0x98] sm:$0xf]
          %v757 = vld [vmem:[#allocation5 + $0x9c] sm:$0xf]
          %v758 = vld [vmem:[#allocation5 + $0xa0] sm:$0xf]
          %v759 = vld [vmem:[#allocation5 + $0xa4] sm:$0xf]
          %v760 = vld [vmem:[#allocation5 + $0xa8] sm:$0xf]
          %v761 = vld [vmem:[#allocation5 + $0xac] sm:$0xf]
          %v762 = vld [vmem:[#allocation5 + $0xb0] sm:$0xf]
          %v763 = vld [vmem:[#allocation5 + $0xb4] sm:$0xf]
          %v764 = vld [vmem:[#allocation5 + $0xb8] sm:$0xf]
          %v765 = vld [vmem:[#allocation5 + $0xbc] sm:$0xf]
          %v766 = vld [vmem:[#allocation5 + $0xc0] sm:$0xf]
          %v767 = vld [vmem:[#allocation5 + $0xc4] sm:$0xf]
          %v768 = vld [vmem:[#allocation5 + $0xc8] sm:$0xf]
          %v769 = vld [vmem:[#allocation5 + $0xcc] sm:$0xf]
          %v770 = vld [vmem:[#allocation5 + $0xd0] sm:$0xf]
          %v771 = vld [vmem:[#allocation5 + $0xd4] sm:$0xf]
          %v772 = vld [vmem:[#allocation5 + $0xd8] sm:$0xf]
          %v773 = vld [vmem:[#allocation5 + $0xdc] sm:$0xf]
          %v774 = vld [vmem:[#allocation5 + $0xe0] sm:$0xf]
          %v775 = vld [vmem:[#allocation5 + $0xe4] sm:$0xf]
          %v776 = vld [vmem:[#allocation5 + $0xe8] sm:$0xf]
          %v777 = vld [vmem:[#allocation5 + $0xec] sm:$0xf]
          %v778 = vld [vmem:[#allocation5 + $0xf0] sm:$0xf]
          %v779 = vld [vmem:[#allocation5 + $0xf4] sm:$0xf]
          %v780 = vld [vmem:[#allocation5 + $0xf8] sm:$0xf]
          %v781 = vld [vmem:[#allocation5 + $0xfc] sm:$0xf]
          %v782 = vld [vmem:[#allocation5 + $0x100] sm:$0xf]
          %v783 = vld [vmem:[#allocation5 + $0x104] sm:$0xf]
          %v784 = vld [vmem:[#allocation5 + $0x108] sm:$0xf]
          %v785 = vld [vmem:[#allocation5 + $0x10c] sm:$0xf]
          %v786 = vld [vmem:[#allocation5 + $0x110] sm:$0xf]
          %v787 = vld [vmem:[#allocation5 + $0x114] sm:$0xf]
          %v788 = vld [vmem:[#allocation5 + $0x118] sm:$0xf]
          %v789 = vld [vmem:[#allocation5 + $0x11c] sm:$0xf]
          %v790 = vld [vmem:[#allocation5 + $0x120] sm:$0xf]
          %v791 = vld [vmem:[#allocation5 + $0x124] sm:$0xf]
          %v792 = vld [vmem:[#allocation5 + $0x128] sm:$0xf]
          %v793 = vld [vmem:[#allocation5 + $0x12c] sm:$0xf]
          %v794 = vld [vmem:[#allocation5 + $0x130] sm:$0xf]
          %v795 = vld [vmem:[#allocation5 + $0x134] sm:$0xf]
          %v796 = vld [vmem:[#allocation5 + $0x138] sm:$0xf]
          %v797 = vld [vmem:[#allocation5 + $0x13c] sm:$0xf]
          %v798 = vld [vmem:[#allocation5 + $0x140] sm:$0xf]
          %v799 = vld [vmem:[#allocation5 + $0x144] sm:$0xf]
          %v800 = vld [vmem:[#allocation5 + $0x148] sm:$0xf]
          %v801 = vld [vmem:[#allocation5 + $0x14c] sm:$0xf]
          %v802 = vld [vmem:[#allocation5 + $0x150] sm:$0xf]
          %v803 = vld [vmem:[#allocation5 + $0x154] sm:$0xf]
          %v804 = vld [vmem:[#allocation5 + $0x158] sm:$0xf]
          %v805 = vld [vmem:[#allocation5 + $0x15c] sm:$0xf]
          %v806 = vld [vmem:[#allocation5 + $0x160] sm:$0xf]
          %v807 = vld [vmem:[#allocation5 + $0x164] sm:$0xf]
          %v808 = vld [vmem:[#allocation5 + $0x168] sm:$0xf]
          %v809 = vld [vmem:[#allocation5 + $0x16c] sm:$0xf]
          %v810 = vld [vmem:[#allocation5 + $0x170] sm:$0xf]
          %v811 = vld [vmem:[#allocation5 + $0x174] sm:$0xf]
          %v812 = vld [vmem:[#allocation5 + $0x178] sm:$0xf]
          %v813 = vld [vmem:[#allocation5 + $0x17c] sm:$0xf]
          %v814 = vld [vmem:[#allocation5 + $0x180] sm:$0xf]
          %v815 = vld [vmem:[#allocation5 + $0x184] sm:$0xf]
          %v816 = vld [vmem:[#allocation5 + $0x188] sm:$0xf]
          %v817 = vld [vmem:[#allocation5 + $0x18c] sm:$0xf]
          %v818 = vld [vmem:[#allocation5 + $0x190] sm:$0xf]
          %v819 = vld [vmem:[#allocation5 + $0x194] sm:$0xf]
          %v820 = vld [vmem:[#allocation5 + $0x198] sm:$0xf]
          %v821 = vld [vmem:[#allocation5 + $0x19c] sm:$0xf]
          %v822 = vld [vmem:[#allocation5 + $0x1a0] sm:$0xf]
          %v823 = vld [vmem:[#allocation5 + $0x1a4] sm:$0xf]
          %v824 = vld [vmem:[#allocation5 + $0x1a8] sm:$0xf]
          %v825 = vld [vmem:[#allocation5 + $0x1ac] sm:$0xf]
          %v826 = vld [vmem:[#allocation5 + $0x1b0] sm:$0xf]
          %v827 = vld [vmem:[#allocation5 + $0x1b4] sm:$0xf]
          %v828 = vld [vmem:[#allocation5 + $0x1b8] sm:$0xf]
          %v829 = vld [vmem:[#allocation5 + $0x1bc] sm:$0xf]
          %v942 = vunpack.c.l.b16 %v718
          %v943 = vunpack.c.l.b16 %v719
          %v944 = vunpack.c.l.b16 %v720
          %v945 = vunpack.c.l.b16 %v721
          %v946 = vunpack.c.l.b16 %v722
          %v947 = vunpack.c.l.b16 %v723
          %v948 = vunpack.c.l.b16 %v724
          %v949 = vunpack.c.l.b16 %v725
          %v950 = vunpack.c.l.b16 %v726
          %v951 = vunpack.c.l.b16 %v727
          %v952 = vunpack.c.l.b16 %v728
          %v953 = vunpack.c.l.b16 %v729
          %v954 = vunpack.c.l.b16 %v730
          %v955 = vunpack.c.l.b16 %v731
          %v956 = vunpack.c.l.b16 %v732
          %v957 = vunpack.c.l.b16 %v733
          %v958 = vunpack.c.l.b16 %v734
          %v959 = vunpack.c.l.b16 %v735
          %v960 = vunpack.c.l.b16 %v736
          %v961 = vunpack.c.l.b16 %v737
          %v962 = vunpack.c.l.b16 %v738
          %v963 = vunpack.c.l.b16 %v739
          %v964 = vunpack.c.l.b16 %v740
          %v965 = vunpack.c.l.b16 %v741
          %v966 = vunpack.c.l.b16 %v742
          %v967 = vunpack.c.l.b16 %v743
          %v968 = vunpack.c.l.b16 %v744
          %v969 = vunpack.c.l.b16 %v745
          %v970 = vunpack.c.l.b16 %v746
          %v971 = vunpack.c.l.b16 %v747
          %v972 = vunpack.c.l.b16 %v748
          %v973 = vunpack.c.l.b16 %v749
          %v974 = vunpack.c.l.b16 %v750
          %v975 = vunpack.c.l.b16 %v751
          %v976 = vunpack.c.l.b16 %v752
          %v977 = vunpack.c.l.b16 %v753
          %v978 = vunpack.c.l.b16 %v754
          %v979 = vunpack.c.l.b16 %v755
          %v980 = vunpack.c.l.b16 %v756
          %v981 = vunpack.c.l.b16 %v757
          %v982 = vunpack.c.l.b16 %v758
          %v983 = vunpack.c.l.b16 %v759
          %v984 = vunpack.c.l.b16 %v760
          %v985 = vunpack.c.l.b16 %v761
          %v986 = vunpack.c.l.b16 %v762
          %v987 = vunpack.c.l.b16 %v763
          %v988 = vunpack.c.l.b16 %v764
          %v989 = vunpack.c.l.b16 %v765
          %v990 = vunpack.c.l.b16 %v766
          %v991 = vunpack.c.l.b16 %v767
          %v992 = vunpack.c.l.b16 %v768
          %v993 = vunpack.c.l.b16 %v769
          %v994 = vunpack.c.l.b16 %v770
          %v995 = vunpack.c.l.b16 %v771
          %v996 = vunpack.c.l.b16 %v772
          %v997 = vunpack.c.l.b16 %v773
          %v998 = vunpack.c.l.b16 %v774
          %v999 = vunpack.c.l.b16 %v775
          %v1000 = vunpack.c.l.b16 %v776
          %v1001 = vunpack.c.l.b16 %v777
          %v1002 = vunpack.c.l.b16 %v778
          %v1003 = vunpack.c.l.b16 %v779
          %v1004 = vunpack.c.l.b16 %v780
          %v1005 = vunpack.c.l.b16 %v781
          %v1006 = vunpack.c.l.b16 %v782
          %v1007 = vunpack.c.l.b16 %v783
          %v1008 = vunpack.c.l.b16 %v784
          %v1009 = vunpack.c.l.b16 %v785
          %v1010 = vunpack.c.l.b16 %v786
          %v1011 = vunpack.c.l.b16 %v787
          %v1012 = vunpack.c.l.b16 %v788
          %v1013 = vunpack.c.l.b16 %v789
          %v1014 = vunpack.c.l.b16 %v790
          %v1015 = vunpack.c.l.b16 %v791
          %v1016 = vunpack.c.l.b16 %v792
          %v1017 = vunpack.c.l.b16 %v793
          %v1018 = vunpack.c.l.b16 %v794
          %v1019 = vunpack.c.l.b16 %v795
          %v1020 = vunpack.c.l.b16 %v796
          %v1021 = vunpack.c.l.b16 %v797
          %v1022 = vunpack.c.l.b16 %v798
          %v1023 = vunpack.c.l.b16 %v799
          %v1024 = vunpack.c.l.b16 %v800
          %v1025 = vunpack.c.l.b16 %v801
          %v1026 = vunpack.c.l.b16 %v802
          %v1027 = vunpack.c.l.b16 %v803
          %v1028 = vunpack.c.l.b16 %v804
          %v1029 = vunpack.c.l.b16 %v805
          %v1030 = vunpack.c.l.b16 %v806
          %v1031 = vunpack.c.l.b16 %v807
          %v1032 = vunpack.c.l.b16 %v808
          %v1033 = vunpack.c.l.b16 %v809
          %v1034 = vunpack.c.l.b16 %v810
          %v1035 = vunpack.c.l.b16 %v811
          %v1036 = vunpack.c.l.b16 %v812
          %v1037 = vunpack.c.l.b16 %v813
          %v1038 = vunpack.c.l.b16 %v814
          %v1039 = vunpack.c.l.b16 %v815
          %v1040 = vunpack.c.l.b16 %v816
          %v1041 = vunpack.c.l.b16 %v817
          %v1042 = vunpack.c.l.b16 %v818
          %v1043 = vunpack.c.l.b16 %v819
          %v1044 = vunpack.c.l.b16 %v820
          %v1045 = vunpack.c.l.b16 %v821
          %v1046 = vunpack.c.l.b16 %v822
          %v1047 = vunpack.c.l.b16 %v823
          %v1048 = vunpack.c.l.b16 %v824
          %v1049 = vunpack.c.l.b16 %v825
          %v1050 = vunpack.c.l.b16 %v826
          %v1051 = vunpack.c.l.b16 %v827
          %v1052 = vunpack.c.l.b16 %v828
          %v1053 = vunpack.c.l.b16 %v829
          %v1054 = vpack.c.b16 %v943, %v942
          %v1055 = vpack.c.b16 %v945, %v944
          %v1056 = vpack.c.b16 %v947, %v946
          %v1057 = vpack.c.b16 %v949, %v948
          %v1058 = vpack.c.b16 %v951, %v950
          %v1059 = vpack.c.b16 %v953, %v952
          %v1060 = vpack.c.b16 %v955, %v954
          %v1061 = vpack.c.b16 %v957, %v956
          %v1062 = vpack.c.b16 %v959, %v958
          %v1063 = vpack.c.b16 %v961, %v960
          %v1064 = vpack.c.b16 %v963, %v962
          %v1065 = vpack.c.b16 %v965, %v964
          %v1066 = vpack.c.b16 %v967, %v966
          %v1067 = vpack.c.b16 %v969, %v968
          %v1068 = vpack.c.b16 %v971, %v970
          %v1069 = vpack.c.b16 %v973, %v972
          %v1070 = vpack.c.b16 %v975, %v974
          %v1071 = vpack.c.b16 %v977, %v976
          %v1072 = vpack.c.b16 %v979, %v978
          %v1073 = vpack.c.b16 %v981, %v980
          %v1074 = vpack.c.b16 %v983, %v982
          %v1075 = vpack.c.b16 %v985, %v984
          %v1076 = vpack.c.b16 %v987, %v986
          %v1077 = vpack.c.b16 %v989, %v988
          %v1078 = vpack.c.b16 %v991, %v990
          %v1079 = vpack.c.b16 %v993, %v992
          %v1080 = vpack.c.b16 %v995, %v994
          %v1081 = vpack.c.b16 %v997, %v996
          %v1082 = vpack.c.b16 %v999, %v998
          %v1083 = vpack.c.b16 %v1001, %v1000
          %v1084 = vpack.c.b16 %v1003, %v1002
          %v1085 = vpack.c.b16 %v1005, %v1004
          %v1086 = vpack.c.b16 %v1007, %v1006
          %v1087 = vpack.c.b16 %v1009, %v1008
          %v1088 = vpack.c.b16 %v1011, %v1010
          %v1089 = vpack.c.b16 %v1013, %v1012
          %v1090 = vpack.c.b16 %v1015, %v1014
          %v1091 = vpack.c.b16 %v1017, %v1016
          %v1092 = vpack.c.b16 %v1019, %v1018
          %v1093 = vpack.c.b16 %v1021, %v1020
          %v1094 = vpack.c.b16 %v1023, %v1022
          %v1095 = vpack.c.b16 %v1025, %v1024
          %v1096 = vpack.c.b16 %v1027, %v1026
          %v1097 = vpack.c.b16 %v1029, %v1028
          %v1098 = vpack.c.b16 %v1031, %v1030
          %v1099 = vpack.c.b16 %v1033, %v1032
          %v1100 = vpack.c.b16 %v1035, %v1034
          %v1101 = vpack.c.b16 %v1037, %v1036
          %v1102 = vpack.c.b16 %v1039, %v1038
          %v1103 = vpack.c.b16 %v1041, %v1040
          %v1104 = vpack.c.b16 %v1043, %v1042
          %v1105 = vpack.c.b16 %v1045, %v1044
          %v1106 = vpack.c.b16 %v1047, %v1046
          %v1107 = vpack.c.b16 %v1049, %v1048
          %v1108 = vpack.c.b16 %v1051, %v1050
          %v1109 = vpack.c.b16 %v1053, %v1052
          %1166 = vmatpush.bf16.xpose.msra.mxu0 0
          %1167 = vmatpush.bf16.xpose.msra.mxu0 0
          %1168 = vmatpush.bf16.xpose.msra.mxu0 0
          %1169 = vmatpush.bf16.xpose.msra.mxu0 0
          %1170 = vmatpush.bf16.xpose.msra.mxu0 0
          %1171 = vmatpush.bf16.xpose.msra.mxu0 0
          %1172 = vmatpush.bf16.xpose.msra.mxu0 0
          %1173 = vmatpush.bf16.xpose.msra.mxu0 %v571
          %1174 = vmatmul.bf16.gmra.mxu0 %v1054
          %v1175 = vpop.f32.mrf.mxu0
          %v1176 = vadd.f32 0.0, %v1175
          %v1177 = vpop.f32.mrf.mxu0
          %v1178 = vadd.f32 0.0, %v1177
          %1179 = vmatmul.bf16.gmra.mxu0 %v1055
          %v1180 = vpop.f32.mrf.mxu0
          %v1181 = vadd.f32 0.0, %v1180
          %v1182 = vpop.f32.mrf.mxu0
          %v1183 = vadd.f32 0.0, %v1182
          %1184 = vmatmul.bf16.gmra.mxu0 %v1056
          %v1185 = vpop.f32.mrf.mxu0
          %v1186 = vadd.f32 0.0, %v1185
          %v1187 = vpop.f32.mrf.mxu0
          %v1188 = vadd.f32 0.0, %v1187
          %1189 = vmatmul.bf16.gmra.mxu0 %v1057
          %v1190 = vpop.f32.mrf.mxu0
          %v1191 = vadd.f32 0.0, %v1190
          %v1192 = vpop.f32.mrf.mxu0
          %v1193 = vadd.f32 0.0, %v1192
          %1194 = vmatmul.bf16.gmra.mxu0 %v1058
          %v1195 = vpop.f32.mrf.mxu0
          %v1196 = vadd.f32 0.0, %v1195
          %v1197 = vpop.f32.mrf.mxu0
          %v1198 = vadd.f32 0.0, %v1197
          %1199 = vmatmul.bf16.gmra.mxu0 %v1059
          %v1200 = vpop.f32.mrf.mxu0
          %v1201 = vadd.f32 0.0, %v1200
          %v1202 = vpop.f32.mrf.mxu0
          %v1203 = vadd.f32 0.0, %v1202
          %1204 = vmatmul.bf16.gmra.mxu0 %v1060
          %v1205 = vpop.f32.mrf.mxu0
          %v1206 = vadd.f32 0.0, %v1205
          %v1207 = vpop.f32.mrf.mxu0
          %v1208 = vadd.f32 0.0, %v1207
          %1209 = vmatmul.bf16.gmra.mxu0 %v1061
          %v1210 = vpop.f32.mrf.mxu0
          %v1211 = vadd.f32 0.0, %v1210
          %v1212 = vpop.f32.mrf.mxu0
          %v1213 = vadd.f32 0.0, %v1212
          %1214 = vmatmul.bf16.gmra.mxu0 %v1062
          %v1215 = vpop.f32.mrf.mxu0
          %v1216 = vadd.f32 0.0, %v1215
          %v1217 = vpop.f32.mrf.mxu0
          %v1218 = vadd.f32 0.0, %v1217
          %1219 = vmatmul.bf16.gmra.mxu0 %v1063
          %v1220 = vpop.f32.mrf.mxu0
          %v1221 = vadd.f32 0.0, %v1220
          %v1222 = vpop.f32.mrf.mxu0
          %v1223 = vadd.f32 0.0, %v1222
          %1224 = vmatmul.bf16.gmra.mxu0 %v1064
          %v1225 = vpop.f32.mrf.mxu0
          %v1226 = vadd.f32 0.0, %v1225
          %v1227 = vpop.f32.mrf.mxu0
          %v1228 = vadd.f32 0.0, %v1227
          %1229 = vmatmul.bf16.gmra.mxu0 %v1065
          %v1230 = vpop.f32.mrf.mxu0
          %v1231 = vadd.f32 0.0, %v1230
          %v1232 = vpop.f32.mrf.mxu0
          %v1233 = vadd.f32 0.0, %v1232
          %1234 = vmatmul.bf16.gmra.mxu0 %v1066
          %v1235 = vpop.f32.mrf.mxu0
          %v1236 = vadd.f32 0.0, %v1235
          %v1237 = vpop.f32.mrf.mxu0
          %v1238 = vadd.f32 0.0, %v1237
          %1239 = vmatmul.bf16.gmra.mxu0 %v1067
          %v1240 = vpop.f32.mrf.mxu0
          %v1241 = vadd.f32 0.0, %v1240
          %v1242 = vpop.f32.mrf.mxu0
          %v1243 = vadd.f32 0.0, %v1242
          %1244 = vmatmul.bf16.gmra.mxu0 %v1068
          %v1245 = vpop.f32.mrf.mxu0
          %v1246 = vadd.f32 0.0, %v1245
          %v1247 = vpop.f32.mrf.mxu0
          %v1248 = vadd.f32 0.0, %v1247
          %1249 = vmatmul.bf16.gmra.mxu0 %v1069
          %v1250 = vpop.f32.mrf.mxu0
          %v1251 = vadd.f32 0.0, %v1250
          %v1252 = vpop.f32.mrf.mxu0
          %v1253 = vadd.f32 0.0, %v1252
          %1254 = vmatmul.bf16.gmra.mxu0 %v1070
          %v1255 = vpop.f32.mrf.mxu0
          %v1256 = vadd.f32 0.0, %v1255
          %v1257 = vpop.f32.mrf.mxu0
          %v1258 = vadd.f32 0.0, %v1257
          %1259 = vmatmul.bf16.gmra.mxu0 %v1071
          %v1260 = vpop.f32.mrf.mxu0
          %v1261 = vadd.f32 0.0, %v1260
          %v1262 = vpop.f32.mrf.mxu0
          %v1263 = vadd.f32 0.0, %v1262
          %1264 = vmatmul.bf16.gmra.mxu0 %v1072
          %v1265 = vpop.f32.mrf.mxu0
          %v1266 = vadd.f32 0.0, %v1265
          %v1267 = vpop.f32.mrf.mxu0
          %v1268 = vadd.f32 0.0, %v1267
          %1269 = vmatmul.bf16.gmra.mxu0 %v1073
          %v1270 = vpop.f32.mrf.mxu0
          %v1271 = vadd.f32 0.0, %v1270
          %v1272 = vpop.f32.mrf.mxu0
          %v1273 = vadd.f32 0.0, %v1272
          %1274 = vmatmul.bf16.gmra.mxu0 %v1074
          %v1275 = vpop.f32.mrf.mxu0
          %v1276 = vadd.f32 0.0, %v1275
          %v1277 = vpop.f32.mrf.mxu0
          %v1278 = vadd.f32 0.0, %v1277
          %1279 = vmatmul.bf16.gmra.mxu0 %v1075
          %v1280 = vpop.f32.mrf.mxu0
          %v1281 = vadd.f32 0.0, %v1280
          %v1282 = vpop.f32.mrf.mxu0
          %v1283 = vadd.f32 0.0, %v1282
          %1284 = vmatmul.bf16.gmra.mxu0 %v1076
          %v1285 = vpop.f32.mrf.mxu0
          %v1286 = vadd.f32 0.0, %v1285
          %v1287 = vpop.f32.mrf.mxu0
          %v1288 = vadd.f32 0.0, %v1287
          %1289 = vmatmul.bf16.gmra.mxu0 %v1077
          %v1290 = vpop.f32.mrf.mxu0
          %v1291 = vadd.f32 0.0, %v1290
          %v1292 = vpop.f32.mrf.mxu0
          %v1293 = vadd.f32 0.0, %v1292
          %1294 = vmatmul.bf16.gmra.mxu0 %v1078
          %v1295 = vpop.f32.mrf.mxu0
          %v1296 = vadd.f32 0.0, %v1295
          %v1297 = vpop.f32.mrf.mxu0
          %v1298 = vadd.f32 0.0, %v1297
          %1299 = vmatmul.bf16.gmra.mxu0 %v1079
          %v1300 = vpop.f32.mrf.mxu0
          %v1301 = vadd.f32 0.0, %v1300
          %v1302 = vpop.f32.mrf.mxu0
          %v1303 = vadd.f32 0.0, %v1302
          %1304 = vmatmul.bf16.gmra.mxu0 %v1080
          %v1305 = vpop.f32.mrf.mxu0
          %v1306 = vadd.f32 0.0, %v1305
          %v1307 = vpop.f32.mrf.mxu0
          %v1308 = vadd.f32 0.0, %v1307
          %1309 = vmatmul.bf16.gmra.mxu0 %v1081
          %v1310 = vpop.f32.mrf.mxu0
          %v1311 = vadd.f32 0.0, %v1310
          %v1312 = vpop.f32.mrf.mxu0
          %v1313 = vadd.f32 0.0, %v1312
          %1314 = vmatmul.bf16.gmra.mxu0 %v1082
          %v1315 = vpop.f32.mrf.mxu0
          %v1316 = vadd.f32 0.0, %v1315
          %v1317 = vpop.f32.mrf.mxu0
          %v1318 = vadd.f32 0.0, %v1317
          %1319 = vmatmul.bf16.gmra.mxu0 %v1083
          %v1320 = vpop.f32.mrf.mxu0
          %v1321 = vadd.f32 0.0, %v1320
          %v1322 = vpop.f32.mrf.mxu0
          %v1323 = vadd.f32 0.0, %v1322
          %1324 = vmatmul.bf16.gmra.mxu0 %v1084
          %v1325 = vpop.f32.mrf.mxu0
          %v1326 = vadd.f32 0.0, %v1325
          %v1327 = vpop.f32.mrf.mxu0
          %v1328 = vadd.f32 0.0, %v1327
          %1329 = vmatmul.bf16.gmra.mxu0 %v1085
          %v1330 = vpop.f32.mrf.mxu0
          %v1331 = vadd.f32 0.0, %v1330
          %v1332 = vpop.f32.mrf.mxu0
          %v1333 = vadd.f32 0.0, %v1332
          %1334 = vmatmul.bf16.gmra.mxu0 %v1086
          %v1335 = vpop.f32.mrf.mxu0
          %v1336 = vadd.f32 0.0, %v1335
          %v1337 = vpop.f32.mrf.mxu0
          %v1338 = vadd.f32 0.0, %v1337
          %1339 = vmatmul.bf16.gmra.mxu0 %v1087
          %v1340 = vpop.f32.mrf.mxu0
          %v1341 = vadd.f32 0.0, %v1340
          %v1342 = vpop.f32.mrf.mxu0
          %v1343 = vadd.f32 0.0, %v1342
          %1344 = vmatmul.bf16.gmra.mxu0 %v1088
          %v1345 = vpop.f32.mrf.mxu0
          %v1346 = vadd.f32 0.0, %v1345
          %v1347 = vpop.f32.mrf.mxu0
          %v1348 = vadd.f32 0.0, %v1347
          %1349 = vmatmul.bf16.gmra.mxu0 %v1089
          %v1350 = vpop.f32.mrf.mxu0
          %v1351 = vadd.f32 0.0, %v1350
          %v1352 = vpop.f32.mrf.mxu0
          %v1353 = vadd.f32 0.0, %v1352
          %1354 = vmatmul.bf16.gmra.mxu0 %v1090
          %v1355 = vpop.f32.mrf.mxu0
          %v1356 = vadd.f32 0.0, %v1355
          %v1357 = vpop.f32.mrf.mxu0
          %v1358 = vadd.f32 0.0, %v1357
          %1359 = vmatmul.bf16.gmra.mxu0 %v1091
          %v1360 = vpop.f32.mrf.mxu0
          %v1361 = vadd.f32 0.0, %v1360
          %v1362 = vpop.f32.mrf.mxu0
          %v1363 = vadd.f32 0.0, %v1362
          %1364 = vmatmul.bf16.gmra.mxu0 %v1092
          %v1365 = vpop.f32.mrf.mxu0
          %v1366 = vadd.f32 0.0, %v1365
          %v1367 = vpop.f32.mrf.mxu0
          %v1368 = vadd.f32 0.0, %v1367
          %1369 = vmatmul.bf16.gmra.mxu0 %v1093
          %v1370 = vpop.f32.mrf.mxu0
          %v1371 = vadd.f32 0.0, %v1370
          %v1372 = vpop.f32.mrf.mxu0
          %v1373 = vadd.f32 0.0, %v1372
          %1374 = vmatmul.bf16.gmra.mxu0 %v1094
          %v1375 = vpop.f32.mrf.mxu0
          %v1376 = vadd.f32 0.0, %v1375
          %v1377 = vpop.f32.mrf.mxu0
          %v1378 = vadd.f32 0.0, %v1377
          %1379 = vmatmul.bf16.gmra.mxu0 %v1095
          %v1380 = vpop.f32.mrf.mxu0
          %v1381 = vadd.f32 0.0, %v1380
          %v1382 = vpop.f32.mrf.mxu0
          %v1383 = vadd.f32 0.0, %v1382
          %1384 = vmatmul.bf16.gmra.mxu0 %v1096
          %v1385 = vpop.f32.mrf.mxu0
          %v1386 = vadd.f32 0.0, %v1385
          %v1387 = vpop.f32.mrf.mxu0
          %v1388 = vadd.f32 0.0, %v1387
          %1389 = vmatmul.bf16.gmra.mxu0 %v1097
          %v1390 = vpop.f32.mrf.mxu0
          %v1391 = vadd.f32 0.0, %v1390
          %v1392 = vpop.f32.mrf.mxu0
          %v1393 = vadd.f32 0.0, %v1392
          %1394 = vmatmul.bf16.gmra.mxu0 %v1098
          %v1395 = vpop.f32.mrf.mxu0
          %v1396 = vadd.f32 0.0, %v1395
          %v1397 = vpop.f32.mrf.mxu0
          %v1398 = vadd.f32 0.0, %v1397
          %1399 = vmatmul.bf16.gmra.mxu0 %v1099
          %v1400 = vpop.f32.mrf.mxu0
          %v1401 = vadd.f32 0.0, %v1400
          %v1402 = vpop.f32.mrf.mxu0
          %v1403 = vadd.f32 0.0, %v1402
          %1404 = vmatmul.bf16.gmra.mxu0 %v1100
          %v1405 = vpop.f32.mrf.mxu0
          %v1406 = vadd.f32 0.0, %v1405
          %v1407 = vpop.f32.mrf.mxu0
          %v1408 = vadd.f32 0.0, %v1407
          %1409 = vmatmul.bf16.gmra.mxu0 %v1101
          %v1410 = vpop.f32.mrf.mxu0
          %v1411 = vadd.f32 0.0, %v1410
          %v1412 = vpop.f32.mrf.mxu0
          %v1413 = vadd.f32 0.0, %v1412
          %1414 = vmatmul.bf16.gmra.mxu0 %v1102
          %v1415 = vpop.f32.mrf.mxu0
          %v1416 = vadd.f32 0.0, %v1415
          %v1417 = vpop.f32.mrf.mxu0
          %v1418 = vadd.f32 0.0, %v1417
          %1419 = vmatmul.bf16.gmra.mxu0 %v1103
          %v1420 = vpop.f32.mrf.mxu0
          %v1421 = vadd.f32 0.0, %v1420
          %v1422 = vpop.f32.mrf.mxu0
          %v1423 = vadd.f32 0.0, %v1422
          %1424 = vmatmul.bf16.gmra.mxu0 %v1104
          %v1425 = vpop.f32.mrf.mxu0
          %v1426 = vadd.f32 0.0, %v1425
          %v1427 = vpop.f32.mrf.mxu0
          %v1428 = vadd.f32 0.0, %v1427
          %1429 = vmatmul.bf16.gmra.mxu0 %v1105
          %v1430 = vpop.f32.mrf.mxu0
          %v1431 = vadd.f32 0.0, %v1430
          %v1432 = vpop.f32.mrf.mxu0
          %v1433 = vadd.f32 0.0, %v1432
          %1434 = vmatmul.bf16.gmra.mxu0 %v1106
          %v1435 = vpop.f32.mrf.mxu0
          %v1436 = vadd.f32 0.0, %v1435
          %v1437 = vpop.f32.mrf.mxu0
          %v1438 = vadd.f32 0.0, %v1437
          %1439 = vmatmul.bf16.gmra.mxu0 %v1107
          %v1440 = vpop.f32.mrf.mxu0
          %v1441 = vadd.f32 0.0, %v1440
          %v1442 = vpop.f32.mrf.mxu0
          %v1443 = vadd.f32 0.0, %v1442
          %1444 = vmatmul.bf16.gmra.mxu0 %v1108
          %v1445 = vpop.f32.mrf.mxu0
          %v1446 = vadd.f32 0.0, %v1445
          %v1447 = vpop.f32.mrf.mxu0
          %v1448 = vadd.f32 0.0, %v1447
          %1449 = vmatmul.bf16.gmra.mxu0 %v1109
          %v1450 = vpop.f32.mrf.mxu0
          %v1451 = vadd.f32 0.0, %v1450
          %v1452 = vpop.f32.mrf.mxu0
          %v1453 = vadd.f32 0.0, %v1452
          %1454 = vdwg.mxu0
          %v1455 = vpack.c.bf16 %v1176, %v1176
          %v1456 = vpack.c.bf16 %v1178, %v1178
          %v1457 = vpack.c.bf16 %v1181, %v1181
          %v1458 = vpack.c.bf16 %v1183, %v1183
          %v1459 = vpack.c.bf16 %v1186, %v1186
          %v1460 = vpack.c.bf16 %v1188, %v1188
          %v1461 = vpack.c.bf16 %v1191, %v1191
          %v1462 = vpack.c.bf16 %v1193, %v1193
          %v1463 = vpack.c.bf16 %v1196, %v1196
          %v1464 = vpack.c.bf16 %v1198, %v1198
          %v1465 = vpack.c.bf16 %v1201, %v1201
          %v1466 = vpack.c.bf16 %v1203, %v1203
          %v1467 = vpack.c.bf16 %v1206, %v1206
          %v1468 = vpack.c.bf16 %v1208, %v1208
          %v1469 = vpack.c.bf16 %v1211, %v1211
          %v1470 = vpack.c.bf16 %v1213, %v1213
          %v1471 = vpack.c.bf16 %v1216, %v1216
          %v1472 = vpack.c.bf16 %v1218, %v1218
          %v1473 = vpack.c.bf16 %v1221, %v1221
          %v1474 = vpack.c.bf16 %v1223, %v1223
          %v1475 = vpack.c.bf16 %v1226, %v1226
          %v1476 = vpack.c.bf16 %v1228, %v1228
          %v1477 = vpack.c.bf16 %v1231, %v1231
          %v1478 = vpack.c.bf16 %v1233, %v1233
          %v1479 = vpack.c.bf16 %v1236, %v1236
          %v1480 = vpack.c.bf16 %v1238, %v1238
          %v1481 = vpack.c.bf16 %v1241, %v1241
          %v1482 = vpack.c.bf16 %v1243, %v1243
          %v1483 = vpack.c.bf16 %v1246, %v1246
          %v1484 = vpack.c.bf16 %v1248, %v1248
          %v1485 = vpack.c.bf16 %v1251, %v1251
          %v1486 = vpack.c.bf16 %v1253, %v1253
          %v1487 = vpack.c.bf16 %v1256, %v1256
          %v1488 = vpack.c.bf16 %v1258, %v1258
          %v1489 = vpack.c.bf16 %v1261, %v1261
          %v1490 = vpack.c.bf16 %v1263, %v1263
          %v1491 = vpack.c.bf16 %v1266, %v1266
          %v1492 = vpack.c.bf16 %v1268, %v1268
          %v1493 = vpack.c.bf16 %v1271, %v1271
          %v1494 = vpack.c.bf16 %v1273, %v1273
          %v1495 = vpack.c.bf16 %v1276, %v1276
          %v1496 = vpack.c.bf16 %v1278, %v1278
          %v1497 = vpack.c.bf16 %v1281, %v1281
          %v1498 = vpack.c.bf16 %v1283, %v1283
          %v1499 = vpack.c.bf16 %v1286, %v1286
          %v1500 = vpack.c.bf16 %v1288, %v1288
          %v1501 = vpack.c.bf16 %v1291, %v1291
          %v1502 = vpack.c.bf16 %v1293, %v1293
          %v1503 = vpack.c.bf16 %v1296, %v1296
          %v1504 = vpack.c.bf16 %v1298, %v1298
          %v1505 = vpack.c.bf16 %v1301, %v1301
          %v1506 = vpack.c.bf16 %v1303, %v1303
          %v1507 = vpack.c.bf16 %v1306, %v1306
          %v1508 = vpack.c.bf16 %v1308, %v1308
          %v1509 = vpack.c.bf16 %v1311, %v1311
          %v1510 = vpack.c.bf16 %v1313, %v1313
          %v1511 = vpack.c.bf16 %v1316, %v1316
          %v1512 = vpack.c.bf16 %v1318, %v1318
          %v1513 = vpack.c.bf16 %v1321, %v1321
          %v1514 = vpack.c.bf16 %v1323, %v1323
          %v1515 = vpack.c.bf16 %v1326, %v1326
          %v1516 = vpack.c.bf16 %v1328, %v1328
          %v1517 = vpack.c.bf16 %v1331, %v1331
          %v1518 = vpack.c.bf16 %v1333, %v1333
          %v1519 = vpack.c.bf16 %v1336, %v1336
          %v1520 = vpack.c.bf16 %v1338, %v1338
          %v1521 = vpack.c.bf16 %v1341, %v1341
          %v1522 = vpack.c.bf16 %v1343, %v1343
          %v1523 = vpack.c.bf16 %v1346, %v1346
          %v1524 = vpack.c.bf16 %v1348, %v1348
          %v1525 = vpack.c.bf16 %v1351, %v1351
          %v1526 = vpack.c.bf16 %v1353, %v1353
          %v1527 = vpack.c.bf16 %v1356, %v1356
          %v1528 = vpack.c.bf16 %v1358, %v1358
          %v1529 = vpack.c.bf16 %v1361, %v1361
          %v1530 = vpack.c.bf16 %v1363, %v1363
          %v1531 = vpack.c.bf16 %v1366, %v1366
          %v1532 = vpack.c.bf16 %v1368, %v1368
          %v1533 = vpack.c.bf16 %v1371, %v1371
          %v1534 = vpack.c.bf16 %v1373, %v1373
          %v1535 = vpack.c.bf16 %v1376, %v1376
          %v1536 = vpack.c.bf16 %v1378, %v1378
          %v1537 = vpack.c.bf16 %v1381, %v1381
          %v1538 = vpack.c.bf16 %v1383, %v1383
          %v1539 = vpack.c.bf16 %v1386, %v1386
          %v1540 = vpack.c.bf16 %v1388, %v1388
          %v1541 = vpack.c.bf16 %v1391, %v1391
          %v1542 = vpack.c.bf16 %v1393, %v1393
          %v1543 = vpack.c.bf16 %v1396, %v1396
          %v1544 = vpack.c.bf16 %v1398, %v1398
          %v1545 = vpack.c.bf16 %v1401, %v1401
          %v1546 = vpack.c.bf16 %v1403, %v1403
          %v1547 = vpack.c.bf16 %v1406, %v1406
          %v1548 = vpack.c.bf16 %v1408, %v1408
          %v1549 = vpack.c.bf16 %v1411, %v1411
          %v1550 = vpack.c.bf16 %v1413, %v1413
          %v1551 = vpack.c.bf16 %v1416, %v1416
          %v1552 = vpack.c.bf16 %v1418, %v1418
          %v1553 = vpack.c.bf16 %v1421, %v1421
          %v1554 = vpack.c.bf16 %v1423, %v1423
          %v1555 = vpack.c.bf16 %v1426, %v1426
          %v1556 = vpack.c.bf16 %v1428, %v1428
          %v1557 = vpack.c.bf16 %v1431, %v1431
          %v1558 = vpack.c.bf16 %v1433, %v1433
          %v1559 = vpack.c.bf16 %v1436, %v1436
          %v1560 = vpack.c.bf16 %v1438, %v1438
          %v1561 = vpack.c.bf16 %v1441, %v1441
          %v1562 = vpack.c.bf16 %v1443, %v1443
          %v1563 = vpack.c.bf16 %v1446, %v1446
          %v1564 = vpack.c.bf16 %v1448, %v1448
          %v1565 = vpack.c.bf16 %v1451, %v1451
          %v1566 = vpack.c.bf16 %v1453, %v1453
          %1567 = vst.msk [vmem:[#allocation3] sm:$0xf] %vm701, %v1455
          %1568 = vst.msk [vmem:[#allocation3 + $0x4] sm:$0xf] %vm701, %v1456
          %1569 = vst.msk [vmem:[#allocation3 + $0x8] sm:$0xf] %vm701, %v1457
          %1570 = vst.msk [vmem:[#allocation3 + $0xc] sm:$0xf] %vm701, %v1458
          %1571 = vst.msk [vmem:[#allocation3 + $0x10] sm:$0xf] %vm701, %v1459
          %1572 = vst.msk [vmem:[#allocation3 + $0x14] sm:$0xf] %vm701, %v1460
          %1573 = vst.msk [vmem:[#allocation3 + $0x18] sm:$0xf] %vm701, %v1461
          %1574 = vst.msk [vmem:[#allocation3 + $0x1c] sm:$0xf] %vm701, %v1462
          %1575 = vst.msk [vmem:[#allocation3 + $0x20] sm:$0xf] %vm701, %v1463
          %1576 = vst.msk [vmem:[#allocation3 + $0x24] sm:$0xf] %vm701, %v1464
          %1577 = vst.msk [vmem:[#allocation3 + $0x28] sm:$0xf] %vm701, %v1465
          %1578 = vst.msk [vmem:[#allocation3 + $0x2c] sm:$0xf] %vm701, %v1466
          %1579 = vst.msk [vmem:[#allocation3 + $0x30] sm:$0xf] %vm701, %v1467
          %1580 = vst.msk [vmem:[#allocation3 + $0x34] sm:$0xf] %vm701, %v1468
          %1581 = vst.msk [vmem:[#allocation3 + $0x38] sm:$0xf] %vm701, %v1469
          %1582 = vst.msk [vmem:[#allocation3 + $0x3c] sm:$0xf] %vm701, %v1470
          %1583 = vst.msk [vmem:[#allocation3 + $0x40] sm:$0xf] %vm701, %v1471
          %1584 = vst.msk [vmem:[#allocation3 + $0x44] sm:$0xf] %vm701, %v1472
          %1585 = vst.msk [vmem:[#allocation3 + $0x48] sm:$0xf] %vm701, %v1473
          %1586 = vst.msk [vmem:[#allocation3 + $0x4c] sm:$0xf] %vm701, %v1474
          %1587 = vst.msk [vmem:[#allocation3 + $0x50] sm:$0xf] %vm701, %v1475
          %1588 = vst.msk [vmem:[#allocation3 + $0x54] sm:$0xf] %vm701, %v1476
          %1589 = vst.msk [vmem:[#allocation3 + $0x58] sm:$0xf] %vm701, %v1477
          %1590 = vst.msk [vmem:[#allocation3 + $0x5c] sm:$0xf] %vm701, %v1478
          %1591 = vst.msk [vmem:[#allocation3 + $0x60] sm:$0xf] %vm701, %v1479
          %1592 = vst.msk [vmem:[#allocation3 + $0x64] sm:$0xf] %vm701, %v1480
          %1593 = vst.msk [vmem:[#allocation3 + $0x68] sm:$0xf] %vm701, %v1481
          %1594 = vst.msk [vmem:[#allocation3 + $0x6c] sm:$0xf] %vm701, %v1482
          %1595 = vst.msk [vmem:[#allocation3 + $0x70] sm:$0xf] %vm701, %v1483
          %1596 = vst.msk [vmem:[#allocation3 + $0x74] sm:$0xf] %vm701, %v1484
          %1597 = vst.msk [vmem:[#allocation3 + $0x78] sm:$0xf] %vm701, %v1485
          %1598 = vst.msk [vmem:[#allocation3 + $0x7c] sm:$0xf] %vm701, %v1486
          %1599 = vst.msk [vmem:[#allocation3 + $0x80] sm:$0xf] %vm701, %v1487
          %1600 = vst.msk [vmem:[#allocation3 + $0x84] sm:$0xf] %vm701, %v1488
          %1601 = vst.msk [vmem:[#allocation3 + $0x88] sm:$0xf] %vm701, %v1489
          %1602 = vst.msk [vmem:[#allocation3 + $0x8c] sm:$0xf] %vm701, %v1490
          %1603 = vst.msk [vmem:[#allocation3 + $0x90] sm:$0xf] %vm701, %v1491
          %1604 = vst.msk [vmem:[#allocation3 + $0x94] sm:$0xf] %vm701, %v1492
          %1605 = vst.msk [vmem:[#allocation3 + $0x98] sm:$0xf] %vm701, %v1493
          %1606 = vst.msk [vmem:[#allocation3 + $0x9c] sm:$0xf] %vm701, %v1494
          %1607 = vst.msk [vmem:[#allocation3 + $0xa0] sm:$0xf] %vm701, %v1495
          %1608 = vst.msk [vmem:[#allocation3 + $0xa4] sm:$0xf] %vm701, %v1496
          %1609 = vst.msk [vmem:[#allocation3 + $0xa8] sm:$0xf] %vm701, %v1497
          %1610 = vst.msk [vmem:[#allocation3 + $0xac] sm:$0xf] %vm701, %v1498
          %1611 = vst.msk [vmem:[#allocation3 + $0xb0] sm:$0xf] %vm701, %v1499
          %1612 = vst.msk [vmem:[#allocation3 + $0xb4] sm:$0xf] %vm701, %v1500
          %1613 = vst.msk [vmem:[#allocation3 + $0xb8] sm:$0xf] %vm701, %v1501
          %1614 = vst.msk [vmem:[#allocation3 + $0xbc] sm:$0xf] %vm701, %v1502
          %1615 = vst.msk [vmem:[#allocation3 + $0xc0] sm:$0xf] %vm701, %v1503
          %1616 = vst.msk [vmem:[#allocation3 + $0xc4] sm:$0xf] %vm701, %v1504
          %1617 = vst.msk [vmem:[#allocation3 + $0xc8] sm:$0xf] %vm701, %v1505
          %1618 = vst.msk [vmem:[#allocation3 + $0xcc] sm:$0xf] %vm701, %v1506
          %1619 = vst.msk [vmem:[#allocation3 + $0xd0] sm:$0xf] %vm701, %v1507
          %1620 = vst.msk [vmem:[#allocation3 + $0xd4] sm:$0xf] %vm701, %v1508
          %1621 = vst.msk [vmem:[#allocation3 + $0xd8] sm:$0xf] %vm701, %v1509
          %1622 = vst.msk [vmem:[#allocation3 + $0xdc] sm:$0xf] %vm701, %v1510
          %1623 = vst.msk [vmem:[#allocation3 + $0xe0] sm:$0xf] %vm701, %v1511
          %1624 = vst.msk [vmem:[#allocation3 + $0xe4] sm:$0xf] %vm701, %v1512
          %1625 = vst.msk [vmem:[#allocation3 + $0xe8] sm:$0xf] %vm701, %v1513
          %1626 = vst.msk [vmem:[#allocation3 + $0xec] sm:$0xf] %vm701, %v1514
          %1627 = vst.msk [vmem:[#allocation3 + $0xf0] sm:$0xf] %vm701, %v1515
          %1628 = vst.msk [vmem:[#allocation3 + $0xf4] sm:$0xf] %vm701, %v1516
          %1629 = vst.msk [vmem:[#allocation3 + $0xf8] sm:$0xf] %vm701, %v1517
          %1630 = vst.msk [vmem:[#allocation3 + $0xfc] sm:$0xf] %vm701, %v1518
          %1631 = vst.msk [vmem:[#allocation3 + $0x100] sm:$0xf] %vm701, %v1519
          %1632 = vst.msk [vmem:[#allocation3 + $0x104] sm:$0xf] %vm701, %v1520
          %1633 = vst.msk [vmem:[#allocation3 + $0x108] sm:$0xf] %vm701, %v1521
          %1634 = vst.msk [vmem:[#allocation3 + $0x10c] sm:$0xf] %vm701, %v1522
          %1635 = vst.msk [vmem:[#allocation3 + $0x110] sm:$0xf] %vm701, %v1523
          %1636 = vst.msk [vmem:[#allocation3 + $0x114] sm:$0xf] %vm701, %v1524
          %1637 = vst.msk [vmem:[#allocation3 + $0x118] sm:$0xf] %vm701, %v1525
          %1638 = vst.msk [vmem:[#allocation3 + $0x11c] sm:$0xf] %vm701, %v1526
          %1639 = vst.msk [vmem:[#allocation3 + $0x120] sm:$0xf] %vm701, %v1527
          %1640 = vst.msk [vmem:[#allocation3 + $0x124] sm:$0xf] %vm701, %v1528
          %1641 = vst.msk [vmem:[#allocation3 + $0x128] sm:$0xf] %vm701, %v1529
          %1642 = vst.msk [vmem:[#allocation3 + $0x12c] sm:$0xf] %vm701, %v1530
          %1643 = vst.msk [vmem:[#allocation3 + $0x130] sm:$0xf] %vm701, %v1531
          %1644 = vst.msk [vmem:[#allocation3 + $0x134] sm:$0xf] %vm701, %v1532
          %1645 = vst.msk [vmem:[#allocation3 + $0x138] sm:$0xf] %vm701, %v1533
          %1646 = vst.msk [vmem:[#allocation3 + $0x13c] sm:$0xf] %vm701, %v1534
          %1647 = vst.msk [vmem:[#allocation3 + $0x140] sm:$0xf] %vm701, %v1535
          %1648 = vst.msk [vmem:[#allocation3 + $0x144] sm:$0xf] %vm701, %v1536
          %1649 = vst.msk [vmem:[#allocation3 + $0x148] sm:$0xf] %vm701, %v1537
          %1650 = vst.msk [vmem:[#allocation3 + $0x14c] sm:$0xf] %vm701, %v1538
          %1651 = vst.msk [vmem:[#allocation3 + $0x150] sm:$0xf] %vm701, %v1539
          %1652 = vst.msk [vmem:[#allocation3 + $0x154] sm:$0xf] %vm701, %v1540
          %1653 = vst.msk [vmem:[#allocation3 + $0x158] sm:$0xf] %vm701, %v1541
          %1654 = vst.msk [vmem:[#allocation3 + $0x15c] sm:$0xf] %vm701, %v1542
          %1655 = vst.msk [vmem:[#allocation3 + $0x160] sm:$0xf] %vm701, %v1543
          %1656 = vst.msk [vmem:[#allocation3 + $0x164] sm:$0xf] %vm701, %v1544
          %1657 = vst.msk [vmem:[#allocation3 + $0x168] sm:$0xf] %vm701, %v1545
          %1658 = vst.msk [vmem:[#allocation3 + $0x16c] sm:$0xf] %vm701, %v1546
          %1659 = vst.msk [vmem:[#allocation3 + $0x170] sm:$0xf] %vm701, %v1547
          %1660 = vst.msk [vmem:[#allocation3 + $0x174] sm:$0xf] %vm701, %v1548
          %1661 = vst.msk [vmem:[#allocation3 + $0x178] sm:$0xf] %vm701, %v1549
          %1662 = vst.msk [vmem:[#allocation3 + $0x17c] sm:$0xf] %vm701, %v1550
          %1663 = vst.msk [vmem:[#allocation3 + $0x180] sm:$0xf] %vm701, %v1551
          %1664 = vst.msk [vmem:[#allocation3 + $0x184] sm:$0xf] %vm701, %v1552
          %1665 = vst.msk [vmem:[#allocation3 + $0x188] sm:$0xf] %vm701, %v1553
          %1666 = vst.msk [vmem:[#allocation3 + $0x18c] sm:$0xf] %vm701, %v1554
          %1667 = vst.msk [vmem:[#allocation3 + $0x190] sm:$0xf] %vm701, %v1555
          %1668 = vst.msk [vmem:[#allocation3 + $0x194] sm:$0xf] %vm701, %v1556
          %1669 = vst.msk [vmem:[#allocation3 + $0x198] sm:$0xf] %vm701, %v1557
          %1670 = vst.msk [vmem:[#allocation3 + $0x19c] sm:$0xf] %vm701, %v1558
          %1671 = vst.msk [vmem:[#allocation3 + $0x1a0] sm:$0xf] %vm701, %v1559
          %1672 = vst.msk [vmem:[#allocation3 + $0x1a4] sm:$0xf] %vm701, %v1560
          %1673 = vst.msk [vmem:[#allocation3 + $0x1a8] sm:$0xf] %vm701, %v1561
          %1674 = vst.msk [vmem:[#allocation3 + $0x1ac] sm:$0xf] %vm701, %v1562
          %1675 = vst.msk [vmem:[#allocation3 + $0x1b0] sm:$0xf] %vm701, %v1563
          %1676 = vst.msk [vmem:[#allocation3 + $0x1b4] sm:$0xf] %vm701, %v1564
          %1677 = vst.msk [vmem:[#allocation3 + $0x1b8] sm:$0xf] %vm701, %v1565
          %1678 = vst.msk [vmem:[#allocation3 + $0x1bc] sm:$0xf] %vm701, %v1566
        $region68: #{_lambda_.1} parent=59 // pred_fallthru
          _
        %v1679 = vld [vmem:[%s469] sm:$0xff]
        %v1680 = vpack.c.bf16 %v1679, %v1679
        %v1681 = vld [vmem:[%s2] sm:$0xff]
        %v1682 = vld [vmem:[%s2 + $0x8] sm:$0xff]
        %v1683 = vld [vmem:[%s2 + $0x10] sm:$0xff]
        %v1684 = vld [vmem:[%s2 + $0x18] sm:$0xff]
        %v1685 = vld [vmem:[%s3] sm:$0x3]
        %v1687 = vperm.slane %v1685, 0
        %v1688 = vperm.slane %v1685, 1
        %v1695 = vunpack.c.l.b16 %v1681
        %v1696 = vunpack.c.h.b16 %v1681
        %v1697 = vunpack.c.l.b16 %v1682
        %v1698 = vunpack.c.h.b16 %v1682
        %v1699 = vunpack.c.l.b16 %v1683
        %v1700 = vunpack.c.h.b16 %v1683
        %v1701 = vunpack.c.l.b16 %v1684
        %v1702 = vunpack.c.h.b16 %v1684
        %v1703 = vpack.c.b16 %v1697, %v1695
        %v1704 = vpack.c.b16 %v1698, %v1696
        %v1705 = vpack.c.b16 %v1701, %v1699
        %v1706 = vpack.c.b16 %v1702, %v1700
        %vm1711 = vcmask 261120
        %v1713 = vsel %vm1711, %v1680, 0
        %1715 = vmatpush.bf16.msra.mxu0 0
        %1716 = vmatpush.bf16.msra.mxu0 0
        %1717 = vmatpush.bf16.msra.mxu0 0
        %1718 = vmatpush.bf16.msra.mxu0 0
        %1719 = vmatpush.bf16.msra.mxu0 0
        %1720 = vmatpush.bf16.msra.mxu0 0
        %1721 = vmatpush.bf16.msra.mxu0 %v1705
        %1722 = vmatpush.bf16.msra.mxu0 %v1703
        %1723 = vmatmul.bf16.gmra.mxu0 %v1713
        %v1724 = vpop.f32.mrf.mxu0
        %v1725 = vadd.f32 %v1687, %v1724
        %v1726 = vpop.f32.mrf.mxu0
        %1727 = vdwg.mxu0
        %1728 = vmatpush.bf16.msra.mxu0 0
        %1729 = vmatpush.bf16.msra.mxu0 0
        %1730 = vmatpush.bf16.msra.mxu0 0
        %1731 = vmatpush.bf16.msra.mxu0 0
        %1732 = vmatpush.bf16.msra.mxu0 0
        %1733 = vmatpush.bf16.msra.mxu0 0
        %1734 = vmatpush.bf16.msra.mxu0 %v1706
        %1735 = vmatpush.bf16.msra.mxu0 %v1704
        %1736 = vmatmul.bf16.gmra.mxu0 %v1713
        %v1737 = vpop.f32.mrf.mxu0
        %v1738 = vadd.f32 %v1688, %v1737
        %v1739 = vpop.f32.mrf.mxu0
        %1740 = vdwg.mxu0
        %v1741 = vmax.f32 %v1725, 0.0
        %v1742 = vmax.f32 %v1738, 0.0
        %v1743 = vpack.c.bf16 %v1741, %v1741
        %v1744 = vpack.c.bf16 %v1742, %v1742
        %v1745 = vld [vmem:[#allocation2] sm:$0xf]
        %v1746 = vld [vmem:[#allocation2 + $0x4] sm:$0xf]
        %v1747 = vld [vmem:[#allocation2 + $0x8] sm:$0xf]
        %v1748 = vld [vmem:[#allocation2 + $0xc] sm:$0xf]
        %v1749 = vld [vmem:[#allocation2 + $0x10] sm:$0xf]
        %v1750 = vld [vmem:[#allocation2 + $0x14] sm:$0xf]
        %v1751 = vld [vmem:[#allocation2 + $0x18] sm:$0xf]
        %v1752 = vld [vmem:[#allocation2 + $0x1c] sm:$0xf]
        %v1753 = vld [vmem:[#allocation2 + $0x20] sm:$0xf]
        %v1754 = vld [vmem:[#allocation2 + $0x24] sm:$0xf]
        %v1755 = vld [vmem:[#allocation2 + $0x28] sm:$0xf]
        %v1756 = vld [vmem:[#allocation2 + $0x2c] sm:$0xf]
        %v1757 = vld [vmem:[#allocation2 + $0x30] sm:$0xf]
        %v1758 = vld [vmem:[#allocation2 + $0x34] sm:$0xf]
        %v1759 = vld [vmem:[#allocation2 + $0x38] sm:$0xf]
        %v1760 = vld [vmem:[#allocation2 + $0x3c] sm:$0xf]
        %v1777 = vunpack.c.l.b16 %v1745
        %v1778 = vunpack.c.l.b16 %v1746
        %v1779 = vunpack.c.l.b16 %v1747
        %v1780 = vunpack.c.l.b16 %v1748
        %v1781 = vunpack.c.l.b16 %v1749
        %v1782 = vunpack.c.l.b16 %v1750
        %v1783 = vunpack.c.l.b16 %v1751
        %v1784 = vunpack.c.l.b16 %v1752
        %v1785 = vunpack.c.l.b16 %v1753
        %v1786 = vunpack.c.l.b16 %v1754
        %v1787 = vunpack.c.l.b16 %v1755
        %v1788 = vunpack.c.l.b16 %v1756
        %v1789 = vunpack.c.l.b16 %v1757
        %v1790 = vunpack.c.l.b16 %v1758
        %v1791 = vunpack.c.l.b16 %v1759
        %v1792 = vunpack.c.l.b16 %v1760
        %v1793 = vpack.c.b16 %v1778, %v1777
        %v1794 = vpack.c.b16 %v1780, %v1779
        %v1795 = vpack.c.b16 %v1782, %v1781
        %v1796 = vpack.c.b16 %v1784, %v1783
        %v1797 = vpack.c.b16 %v1786, %v1785
        %v1798 = vpack.c.b16 %v1788, %v1787
        %v1799 = vpack.c.b16 %v1790, %v1789
        %v1800 = vpack.c.b16 %v1792, %v1791
        %1809 = vmatpush.bf16.msra.mxu0 %v1800
        %1810 = vmatpush.bf16.msra.mxu0 %v1799
        %1811 = vmatpush.bf16.msra.mxu0 %v1798
        %1812 = vmatpush.bf16.msra.mxu0 %v1797
        %1813 = vmatpush.bf16.msra.mxu0 %v1796
        %1814 = vmatpush.bf16.msra.mxu0 %v1795
        %1815 = vmatpush.bf16.msra.mxu0 %v1794
        %1816 = vmatpush.bf16.msra.mxu0 %v1793
        %1817 = vmatmul.bf16.gmra.mxu0 %v1743
        %v1818 = vpop.f32.mrf.mxu0
        %v1819 = vadd.f32 0.0, %v1818
        %v1820 = vpop.f32.mrf.mxu0
        %1821 = vdwg.mxu0
        %v1822 = vld [vmem:[%s483] sm:$0xff]
        %v1823 = vld [vmem:[%s489] sm:$0x1]
        %1825 = vset.pattern.permute.xlu0 0
        %1826 = vperm.xlu0 %1825, %v1822
        %v1827 = vpop.permute.xlu0 %1826
        %v1830 = vperm.slane %v1823, 0
        %v1832 = vmul.f32 %v1827, %v1830
        %v1833 = vsub.f32 0.0, %v1819
        %v1834 = vmul.f32 %v1833, 1.442695
        %v1835 = vpow.pop %v1834
        %v1836 = vadd.f32 %v1835, 1.0
        %v1837 = vrcp.pop %v1836
        %v1838 = vmul.f32 %v1832, %v1837
        %v1839 = vld [vmem:[#allocation3] sm:$0xf]
        %v1840 = vld [vmem:[#allocation3 + $0x4] sm:$0xf]
        %v1841 = vld [vmem:[#allocation3 + $0x8] sm:$0xf]
        %v1842 = vld [vmem:[#allocation3 + $0xc] sm:$0xf]
        %v1843 = vld [vmem:[#allocation3 + $0x10] sm:$0xf]
        %v1844 = vld [vmem:[#allocation3 + $0x14] sm:$0xf]
        %v1845 = vld [vmem:[#allocation3 + $0x18] sm:$0xf]
        %v1846 = vld [vmem:[#allocation3 + $0x1c] sm:$0xf]
        %v1847 = vld [vmem:[#allocation3 + $0x20] sm:$0xf]
        %v1848 = vld [vmem:[#allocation3 + $0x24] sm:$0xf]
        %v1849 = vld [vmem:[#allocation3 + $0x28] sm:$0xf]
        %v1850 = vld [vmem:[#allocation3 + $0x2c] sm:$0xf]
        %v1851 = vld [vmem:[#allocation3 + $0x30] sm:$0xf]
        %v1852 = vld [vmem:[#allocation3 + $0x34] sm:$0xf]
        %v1853 = vld [vmem:[#allocation3 + $0x38] sm:$0xf]
        %v1854 = vld [vmem:[#allocation3 + $0x3c] sm:$0xf]
        %v1871 = vunpack.c.l.b16 %v1839
        %v1872 = vunpack.c.l.b16 %v1840
        %v1873 = vunpack.c.l.b16 %v1841
        %v1874 = vunpack.c.l.b16 %v1842
        %v1875 = vunpack.c.l.b16 %v1843
        %v1876 = vunpack.c.l.b16 %v1844
        %v1877 = vunpack.c.l.b16 %v1845
        %v1878 = vunpack.c.l.b16 %v1846
        %v1879 = vunpack.c.l.b16 %v1847
        %v1880 = vunpack.c.l.b16 %v1848
        %v1881 = vunpack.c.l.b16 %v1849
        %v1882 = vunpack.c.l.b16 %v1850
        %v1883 = vunpack.c.l.b16 %v1851
        %v1884 = vunpack.c.l.b16 %v1852
        %v1885 = vunpack.c.l.b16 %v1853
        %v1886 = vunpack.c.l.b16 %v1854
        %v1887 = vpack.c.b16 %v1872, %v1871
        %v1888 = vpack.c.b16 %v1874, %v1873
        %v1889 = vpack.c.b16 %v1876, %v1875
        %v1890 = vpack.c.b16 %v1878, %v1877
        %v1891 = vpack.c.b16 %v1880, %v1879
        %v1892 = vpack.c.b16 %v1882, %v1881
        %v1893 = vpack.c.b16 %v1884, %v1883
        %v1894 = vpack.c.b16 %v1886, %v1885
        %1903 = vmatpush.bf16.msra.mxu0 %v1894
        %1904 = vmatpush.bf16.msra.mxu0 %v1893
        %1905 = vmatpush.bf16.msra.mxu0 %v1892
        %1906 = vmatpush.bf16.msra.mxu0 %v1891
        %1907 = vmatpush.bf16.msra.mxu0 %v1890
        %1908 = vmatpush.bf16.msra.mxu0 %v1889
        %1909 = vmatpush.bf16.msra.mxu0 %v1888
        %1910 = vmatpush.bf16.msra.mxu0 %v1887
        %1911 = vmatmul.bf16.gmra.mxu0 %v1744
        %v1912 = vpop.f32.mrf.mxu0
        %v1913 = vadd.f32 0.0, %v1912
        %v1914 = vpop.f32.mrf.mxu0
        %1915 = vdwg.mxu0
        %vm1916 = vcmask 64512
        %1917 = vst.msk [vmem:[#allocation4] sm:$0xff] %vm1916, %v1913
        %s1918 = scalar_lea.vmem [#allocation3], 64
        %v1919 = vld [vmem:[%s1918] sm:$0xf]
        %v1920 = vld [vmem:[%s1918 + $0x4] sm:$0xf]
        %v1921 = vld [vmem:[%s1918 + $0x8] sm:$0xf]
        %v1922 = vld [vmem:[%s1918 + $0xc] sm:$0xf]
        %v1923 = vld [vmem:[%s1918 + $0x10] sm:$0xf]
        %v1924 = vld [vmem:[%s1918 + $0x14] sm:$0xf]
        %v1925 = vld [vmem:[%s1918 + $0x18] sm:$0xf]
        %v1926 = vld [vmem:[%s1918 + $0x1c] sm:$0xf]
        %v1927 = vld [vmem:[%s1918 + $0x20] sm:$0xf]
        %v1928 = vld [vmem:[%s1918 + $0x24] sm:$0xf]
        %v1929 = vld [vmem:[%s1918 + $0x28] sm:$0xf]
        %v1930 = vld [vmem:[%s1918 + $0x2c] sm:$0xf]
        %v1931 = vld [vmem:[%s1918 + $0x30] sm:$0xf]
        %v1932 = vld [vmem:[%s1918 + $0x34] sm:$0xf]
        %v1933 = vld [vmem:[%s1918 + $0x38] sm:$0xf]
        %v1934 = vld [vmem:[%s1918 + $0x3c] sm:$0xf]
        %v1951 = vunpack.c.l.b16 %v1919
        %v1952 = vunpack.c.l.b16 %v1920
        %v1953 = vunpack.c.l.b16 %v1921
        %v1954 = vunpack.c.l.b16 %v1922
        %v1955 = vunpack.c.l.b16 %v1923
        %v1956 = vunpack.c.l.b16 %v1924
        %v1957 = vunpack.c.l.b16 %v1925
        %v1958 = vunpack.c.l.b16 %v1926
        %v1959 = vunpack.c.l.b16 %v1927
        %v1960 = vunpack.c.l.b16 %v1928
        %v1961 = vunpack.c.l.b16 %v1929
        %v1962 = vunpack.c.l.b16 %v1930
        %v1963 = vunpack.c.l.b16 %v1931
        %v1964 = vunpack.c.l.b16 %v1932
        %v1965 = vunpack.c.l.b16 %v1933
        %v1966 = vunpack.c.l.b16 %v1934
        %v1967 = vpack.c.b16 %v1952, %v1951
        %v1968 = vpack.c.b16 %v1954, %v1953
        %v1969 = vpack.c.b16 %v1956, %v1955
        %v1970 = vpack.c.b16 %v1958, %v1957
        %v1971 = vpack.c.b16 %v1960, %v1959
        %v1972 = vpack.c.b16 %v1962, %v1961
        %v1973 = vpack.c.b16 %v1964, %v1963
        %v1974 = vpack.c.b16 %v1966, %v1965
        %1983 = vmatpush.bf16.msra.mxu0 %v1974
        %1984 = vmatpush.bf16.msra.mxu0 %v1973
        %1985 = vmatpush.bf16.msra.mxu0 %v1972
        %1986 = vmatpush.bf16.msra.mxu0 %v1971
        %1987 = vmatpush.bf16.msra.mxu0 %v1970
        %1988 = vmatpush.bf16.msra.mxu0 %v1969
        %1989 = vmatpush.bf16.msra.mxu0 %v1968
        %1990 = vmatpush.bf16.msra.mxu0 %v1967
        %1991 = vmatmul.bf16.gmra.mxu0 %v1744
        %v1992 = vpop.f32.mrf.mxu0
        %v1993 = vadd.f32 0.0, %v1992
        %v1994 = vpop.f32.mrf.mxu0
        %1995 = vdwg.mxu0
        %s1996 = scalar_lea.vmem [#allocation4], 8
        %1997 = vst.msk [vmem:[%s1996] sm:$0xff] %vm1916, %v1993
        %s1998 = scalar_lea.vmem [#allocation3], 128
        %v1999 = vld [vmem:[%s1998] sm:$0xf]
        %v2000 = vld [vmem:[%s1998 + $0x4] sm:$0xf]
        %v2001 = vld [vmem:[%s1998 + $0x8] sm:$0xf]
        %v2002 = vld [vmem:[%s1998 + $0xc] sm:$0xf]
        %v2003 = vld [vmem:[%s1998 + $0x10] sm:$0xf]
        %v2004 = vld [vmem:[%s1998 + $0x14] sm:$0xf]
        %v2005 = vld [vmem:[%s1998 + $0x18] sm:$0xf]
        %v2006 = vld [vmem:[%s1998 + $0x1c] sm:$0xf]
        %v2007 = vld [vmem:[%s1998 + $0x20] sm:$0xf]
        %v2008 = vld [vmem:[%s1998 + $0x24] sm:$0xf]
        %v2009 = vld [vmem:[%s1998 + $0x28] sm:$0xf]
        %v2010 = vld [vmem:[%s1998 + $0x2c] sm:$0xf]
        %v2011 = vld [vmem:[%s1998 + $0x30] sm:$0xf]
        %v2012 = vld [vmem:[%s1998 + $0x34] sm:$0xf]
        %v2013 = vld [vmem:[%s1998 + $0x38] sm:$0xf]
        %v2014 = vld [vmem:[%s1998 + $0x3c] sm:$0xf]
        %v2031 = vunpack.c.l.b16 %v1999
        %v2032 = vunpack.c.l.b16 %v2000
        %v2033 = vunpack.c.l.b16 %v2001
        %v2034 = vunpack.c.l.b16 %v2002
        %v2035 = vunpack.c.l.b16 %v2003
        %v2036 = vunpack.c.l.b16 %v2004
        %v2037 = vunpack.c.l.b16 %v2005
        %v2038 = vunpack.c.l.b16 %v2006
        %v2039 = vunpack.c.l.b16 %v2007
        %v2040 = vunpack.c.l.b16 %v2008
        %v2041 = vunpack.c.l.b16 %v2009
        %v2042 = vunpack.c.l.b16 %v2010
        %v2043 = vunpack.c.l.b16 %v2011
        %v2044 = vunpack.c.l.b16 %v2012
        %v2045 = vunpack.c.l.b16 %v2013
        %v2046 = vunpack.c.l.b16 %v2014
        %v2047 = vpack.c.b16 %v2032, %v2031
        %v2048 = vpack.c.b16 %v2034, %v2033
        %v2049 = vpack.c.b16 %v2036, %v2035
        %v2050 = vpack.c.b16 %v2038, %v2037
        %v2051 = vpack.c.b16 %v2040, %v2039
        %v2052 = vpack.c.b16 %v2042, %v2041
        %v2053 = vpack.c.b16 %v2044, %v2043
        %v2054 = vpack.c.b16 %v2046, %v2045
        %2063 = vmatpush.bf16.msra.mxu0 %v2054
        %2064 = vmatpush.bf16.msra.mxu0 %v2053
        %2065 = vmatpush.bf16.msra.mxu0 %v2052
        %2066 = vmatpush.bf16.msra.mxu0 %v2051
        %2067 = vmatpush.bf16.msra.mxu0 %v2050
        %2068 = vmatpush.bf16.msra.mxu0 %v2049
        %2069 = vmatpush.bf16.msra.mxu0 %v2048
        %2070 = vmatpush.bf16.msra.mxu0 %v2047
        %2071 = vmatmul.bf16.gmra.mxu0 %v1744
        %v2072 = vpop.f32.mrf.mxu0
        %v2073 = vadd.f32 0.0, %v2072
        %v2074 = vpop.f32.mrf.mxu0
        %2075 = vdwg.mxu0
        %s2076 = scalar_lea.vmem [#allocation4], 16
        %2077 = vst.msk [vmem:[%s2076] sm:$0xff] %vm1916, %v2073
        %s2078 = scalar_lea.vmem [#allocation3], 192
        %v2079 = vld [vmem:[%s2078] sm:$0xf]
        %v2080 = vld [vmem:[%s2078 + $0x4] sm:$0xf]
        %v2081 = vld [vmem:[%s2078 + $0x8] sm:$0xf]
        %v2082 = vld [vmem:[%s2078 + $0xc] sm:$0xf]
        %v2083 = vld [vmem:[%s2078 + $0x10] sm:$0xf]
        %v2084 = vld [vmem:[%s2078 + $0x14] sm:$0xf]
        %v2085 = vld [vmem:[%s2078 + $0x18] sm:$0xf]
        %v2086 = vld [vmem:[%s2078 + $0x1c] sm:$0xf]
        %v2087 = vld [vmem:[%s2078 + $0x20] sm:$0xf]
        %v2088 = vld [vmem:[%s2078 + $0x24] sm:$0xf]
        %v2089 = vld [vmem:[%s2078 + $0x28] sm:$0xf]
        %v2090 = vld [vmem:[%s2078 + $0x2c] sm:$0xf]
        %v2091 = vld [vmem:[%s2078 + $0x30] sm:$0xf]
        %v2092 = vld [vmem:[%s2078 + $0x34] sm:$0xf]
        %v2093 = vld [vmem:[%s2078 + $0x38] sm:$0xf]
        %v2094 = vld [vmem:[%s2078 + $0x3c] sm:$0xf]
        %v2111 = vunpack.c.l.b16 %v2079
        %v2112 = vunpack.c.l.b16 %v2080
        %v2113 = vunpack.c.l.b16 %v2081
        %v2114 = vunpack.c.l.b16 %v2082
        %v2115 = vunpack.c.l.b16 %v2083
        %v2116 = vunpack.c.l.b16 %v2084
        %v2117 = vunpack.c.l.b16 %v2085
        %v2118 = vunpack.c.l.b16 %v2086
        %v2119 = vunpack.c.l.b16 %v2087
        %v2120 = vunpack.c.l.b16 %v2088
        %v2121 = vunpack.c.l.b16 %v2089
        %v2122 = vunpack.c.l.b16 %v2090
        %v2123 = vunpack.c.l.b16 %v2091
        %v2124 = vunpack.c.l.b16 %v2092
        %v2125 = vunpack.c.l.b16 %v2093
        %v2126 = vunpack.c.l.b16 %v2094
        %v2127 = vpack.c.b16 %v2112, %v2111
        %v2128 = vpack.c.b16 %v2114, %v2113
        %v2129 = vpack.c.b16 %v2116, %v2115
        %v2130 = vpack.c.b16 %v2118, %v2117
        %v2131 = vpack.c.b16 %v2120, %v2119
        %v2132 = vpack.c.b16 %v2122, %v2121
        %v2133 = vpack.c.b16 %v2124, %v2123
        %v2134 = vpack.c.b16 %v2126, %v2125
        %2143 = vmatpush.bf16.msra.mxu0 %v2134
        %2144 = vmatpush.bf16.msra.mxu0 %v2133
        %2145 = vmatpush.bf16.msra.mxu0 %v2132
        %2146 = vmatpush.bf16.msra.mxu0 %v2131
        %2147 = vmatpush.bf16.msra.mxu0 %v2130
        %2148 = vmatpush.bf16.msra.mxu0 %v2129
        %2149 = vmatpush.bf16.msra.mxu0 %v2128
        %2150 = vmatpush.bf16.msra.mxu0 %v2127
        %2151 = vmatmul.bf16.gmra.mxu0 %v1744
        %v2152 = vpop.f32.mrf.mxu0
        %v2153 = vadd.f32 0.0, %v2152
        %v2154 = vpop.f32.mrf.mxu0
        %2155 = vdwg.mxu0
        %s2156 = scalar_lea.vmem [#allocation4], 24
        %2157 = vst.msk [vmem:[%s2156] sm:$0xff] %vm1916, %v2153
        %s2158 = scalar_lea.vmem [#allocation3], 256
        %v2159 = vld [vmem:[%s2158] sm:$0xf]
        %v2160 = vld [vmem:[%s2158 + $0x4] sm:$0xf]
        %v2161 = vld [vmem:[%s2158 + $0x8] sm:$0xf]
        %v2162 = vld [vmem:[%s2158 + $0xc] sm:$0xf]
        %v2163 = vld [vmem:[%s2158 + $0x10] sm:$0xf]
        %v2164 = vld [vmem:[%s2158 + $0x14] sm:$0xf]
        %v2165 = vld [vmem:[%s2158 + $0x18] sm:$0xf]
        %v2166 = vld [vmem:[%s2158 + $0x1c] sm:$0xf]
        %v2167 = vld [vmem:[%s2158 + $0x20] sm:$0xf]
        %v2168 = vld [vmem:[%s2158 + $0x24] sm:$0xf]
        %v2169 = vld [vmem:[%s2158 + $0x28] sm:$0xf]
        %v2170 = vld [vmem:[%s2158 + $0x2c] sm:$0xf]
        %v2171 = vld [vmem:[%s2158 + $0x30] sm:$0xf]
        %v2172 = vld [vmem:[%s2158 + $0x34] sm:$0xf]
        %v2173 = vld [vmem:[%s2158 + $0x38] sm:$0xf]
        %v2174 = vld [vmem:[%s2158 + $0x3c] sm:$0xf]
        %v2191 = vunpack.c.l.b16 %v2159
        %v2192 = vunpack.c.l.b16 %v2160
        %v2193 = vunpack.c.l.b16 %v2161
        %v2194 = vunpack.c.l.b16 %v2162
        %v2195 = vunpack.c.l.b16 %v2163
        %v2196 = vunpack.c.l.b16 %v2164
        %v2197 = vunpack.c.l.b16 %v2165
        %v2198 = vunpack.c.l.b16 %v2166
        %v2199 = vunpack.c.l.b16 %v2167
        %v2200 = vunpack.c.l.b16 %v2168
        %v2201 = vunpack.c.l.b16 %v2169
        %v2202 = vunpack.c.l.b16 %v2170
        %v2203 = vunpack.c.l.b16 %v2171
        %v2204 = vunpack.c.l.b16 %v2172
        %v2205 = vunpack.c.l.b16 %v2173
        %v2206 = vunpack.c.l.b16 %v2174
        %v2207 = vpack.c.b16 %v2192, %v2191
        %v2208 = vpack.c.b16 %v2194, %v2193
        %v2209 = vpack.c.b16 %v2196, %v2195
        %v2210 = vpack.c.b16 %v2198, %v2197
        %v2211 = vpack.c.b16 %v2200, %v2199
        %v2212 = vpack.c.b16 %v2202, %v2201
        %v2213 = vpack.c.b16 %v2204, %v2203
        %v2214 = vpack.c.b16 %v2206, %v2205
        %2223 = vmatpush.bf16.msra.mxu0 %v2214
        %2224 = vmatpush.bf16.msra.mxu0 %v2213
        %2225 = vmatpush.bf16.msra.mxu0 %v2212
        %2226 = vmatpush.bf16.msra.mxu0 %v2211
        %2227 = vmatpush.bf16.msra.mxu0 %v2210
        %2228 = vmatpush.bf16.msra.mxu0 %v2209
        %2229 = vmatpush.bf16.msra.mxu0 %v2208
        %2230 = vmatpush.bf16.msra.mxu0 %v2207
        %2231 = vmatmul.bf16.gmra.mxu0 %v1744
        %v2232 = vpop.f32.mrf.mxu0
        %v2233 = vadd.f32 0.0, %v2232
        %v2234 = vpop.f32.mrf.mxu0
        %2235 = vdwg.mxu0
        %s2236 = scalar_lea.vmem [#allocation4], 32
        %2237 = vst.msk [vmem:[%s2236] sm:$0xff] %vm1916, %v2233
        %s2238 = scalar_lea.vmem [#allocation3], 320
        %v2239 = vld [vmem:[%s2238] sm:$0xf]
        %v2240 = vld [vmem:[%s2238 + $0x4] sm:$0xf]
        %v2241 = vld [vmem:[%s2238 + $0x8] sm:$0xf]
        %v2242 = vld [vmem:[%s2238 + $0xc] sm:$0xf]
        %v2243 = vld [vmem:[%s2238 + $0x10] sm:$0xf]
        %v2244 = vld [vmem:[%s2238 + $0x14] sm:$0xf]
        %v2245 = vld [vmem:[%s2238 + $0x18] sm:$0xf]
        %v2246 = vld [vmem:[%s2238 + $0x1c] sm:$0xf]
        %v2247 = vld [vmem:[%s2238 + $0x20] sm:$0xf]
        %v2248 = vld [vmem:[%s2238 + $0x24] sm:$0xf]
        %v2249 = vld [vmem:[%s2238 + $0x28] sm:$0xf]
        %v2250 = vld [vmem:[%s2238 + $0x2c] sm:$0xf]
        %v2251 = vld [vmem:[%s2238 + $0x30] sm:$0xf]
        %v2252 = vld [vmem:[%s2238 + $0x34] sm:$0xf]
        %v2253 = vld [vmem:[%s2238 + $0x38] sm:$0xf]
        %v2254 = vld [vmem:[%s2238 + $0x3c] sm:$0xf]
        %v2271 = vunpack.c.l.b16 %v2239
        %v2272 = vunpack.c.l.b16 %v2240
        %v2273 = vunpack.c.l.b16 %v2241
        %v2274 = vunpack.c.l.b16 %v2242
        %v2275 = vunpack.c.l.b16 %v2243
        %v2276 = vunpack.c.l.b16 %v2244
        %v2277 = vunpack.c.l.b16 %v2245
        %v2278 = vunpack.c.l.b16 %v2246
        %v2279 = vunpack.c.l.b16 %v2247
        %v2280 = vunpack.c.l.b16 %v2248
        %v2281 = vunpack.c.l.b16 %v2249
        %v2282 = vunpack.c.l.b16 %v2250
        %v2283 = vunpack.c.l.b16 %v2251
        %v2284 = vunpack.c.l.b16 %v2252
        %v2285 = vunpack.c.l.b16 %v2253
        %v2286 = vunpack.c.l.b16 %v2254
        %v2287 = vpack.c.b16 %v2272, %v2271
        %v2288 = vpack.c.b16 %v2274, %v2273
        %v2289 = vpack.c.b16 %v2276, %v2275
        %v2290 = vpack.c.b16 %v2278, %v2277
        %v2291 = vpack.c.b16 %v2280, %v2279
        %v2292 = vpack.c.b16 %v2282, %v2281
        %v2293 = vpack.c.b16 %v2284, %v2283
        %v2294 = vpack.c.b16 %v2286, %v2285
        %2303 = vmatpush.bf16.msra.mxu0 %v2294
        %2304 = vmatpush.bf16.msra.mxu0 %v2293
        %2305 = vmatpush.bf16.msra.mxu0 %v2292
        %2306 = vmatpush.bf16.msra.mxu0 %v2291
        %2307 = vmatpush.bf16.msra.mxu0 %v2290
        %2308 = vmatpush.bf16.msra.mxu0 %v2289
        %2309 = vmatpush.bf16.msra.mxu0 %v2288
        %2310 = vmatpush.bf16.msra.mxu0 %v2287
        %2311 = vmatmul.bf16.gmra.mxu0 %v1744
        %v2312 = vpop.f32.mrf.mxu0
        %v2313 = vadd.f32 0.0, %v2312
        %v2314 = vpop.f32.mrf.mxu0
        %2315 = vdwg.mxu0
        %s2316 = scalar_lea.vmem [#allocation4], 40
        %2317 = vst.msk [vmem:[%s2316] sm:$0xff] %vm1916, %v2313
        %s2318 = scalar_lea.vmem [#allocation3], 384
        %v2319 = vld [vmem:[%s2318] sm:$0xf]
        %v2320 = vld [vmem:[%s2318 + $0x4] sm:$0xf]
        %v2321 = vld [vmem:[%s2318 + $0x8] sm:$0xf]
        %v2322 = vld [vmem:[%s2318 + $0xc] sm:$0xf]
        %v2323 = vld [vmem:[%s2318 + $0x10] sm:$0xf]
        %v2324 = vld [vmem:[%s2318 + $0x14] sm:$0xf]
        %v2325 = vld [vmem:[%s2318 + $0x18] sm:$0xf]
        %v2326 = vld [vmem:[%s2318 + $0x1c] sm:$0xf]
        %v2327 = vld [vmem:[%s2318 + $0x20] sm:$0xf]
        %v2328 = vld [vmem:[%s2318 + $0x24] sm:$0xf]
        %v2329 = vld [vmem:[%s2318 + $0x28] sm:$0xf]
        %v2330 = vld [vmem:[%s2318 + $0x2c] sm:$0xf]
        %v2331 = vld [vmem:[%s2318 + $0x30] sm:$0xf]
        %v2332 = vld [vmem:[%s2318 + $0x34] sm:$0xf]
        %v2333 = vld [vmem:[%s2318 + $0x38] sm:$0xf]
        %v2334 = vld [vmem:[%s2318 + $0x3c] sm:$0xf]
        %v2351 = vunpack.c.l.b16 %v2319
        %v2352 = vunpack.c.l.b16 %v2320
        %v2353 = vunpack.c.l.b16 %v2321
        %v2354 = vunpack.c.l.b16 %v2322
        %v2355 = vunpack.c.l.b16 %v2323
        %v2356 = vunpack.c.l.b16 %v2324
        %v2357 = vunpack.c.l.b16 %v2325
        %v2358 = vunpack.c.l.b16 %v2326
        %v2359 = vunpack.c.l.b16 %v2327
        %v2360 = vunpack.c.l.b16 %v2328
        %v2361 = vunpack.c.l.b16 %v2329
        %v2362 = vunpack.c.l.b16 %v2330
        %v2363 = vunpack.c.l.b16 %v2331
        %v2364 = vunpack.c.l.b16 %v2332
        %v2365 = vunpack.c.l.b16 %v2333
        %v2366 = vunpack.c.l.b16 %v2334
        %v2367 = vpack.c.b16 %v2352, %v2351
        %v2368 = vpack.c.b16 %v2354, %v2353
        %v2369 = vpack.c.b16 %v2356, %v2355
        %v2370 = vpack.c.b16 %v2358, %v2357
        %v2371 = vpack.c.b16 %v2360, %v2359
        %v2372 = vpack.c.b16 %v2362, %v2361
        %v2373 = vpack.c.b16 %v2364, %v2363
        %v2374 = vpack.c.b16 %v2366, %v2365
        %2383 = vmatpush.bf16.msra.mxu0 %v2374
        %2384 = vmatpush.bf16.msra.mxu0 %v2373
        %2385 = vmatpush.bf16.msra.mxu0 %v2372
        %2386 = vmatpush.bf16.msra.mxu0 %v2371
        %2387 = vmatpush.bf16.msra.mxu0 %v2370
        %2388 = vmatpush.bf16.msra.mxu0 %v2369
        %2389 = vmatpush.bf16.msra.mxu0 %v2368
        %2390 = vmatpush.bf16.msra.mxu0 %v2367
        %2391 = vmatmul.bf16.gmra.mxu0 %v1744
        %v2392 = vpop.f32.mrf.mxu0
        %v2393 = vadd.f32 0.0, %v2392
        %v2394 = vpop.f32.mrf.mxu0
        %2395 = vdwg.mxu0
        %s2396 = scalar_lea.vmem [#allocation4], 48
        %2397 = vst.msk [vmem:[%s2396] sm:$0xff] %vm1916, %v2393
        %v2398 = vld [vmem:[#allocation4] sm:$0xff]
        %v2399 = vld [vmem:[#allocation4 + $0x8] sm:$0xff]
        %v2400 = vld [vmem:[#allocation4 + $0x10] sm:$0xff]
        %v2401 = vld [vmem:[#allocation4 + $0x18] sm:$0xff]
        %v2402 = vld [vmem:[#allocation4 + $0x20] sm:$0xff]
        %v2403 = vld [vmem:[#allocation4 + $0x28] sm:$0xff]
        %v2404 = vld [vmem:[#allocation4 + $0x30] sm:$0xff]
        %v2405 = vsel %vm1916, %v2398, -inf
        %v2406 = vsel %vm1916, %v2399, -inf
        %v2407 = vsel %vm1916, %v2400, -inf
        %v2408 = vsel %vm1916, %v2401, -inf
        %v2409 = vsel %vm1916, %v2402, -inf
        %v2410 = vmax.f32 %v2405, %v2409
        %v2411 = vsel %vm1916, %v2403, -inf
        %v2412 = vmax.f32 %v2406, %v2411
        %v2413 = vsel %vm1916, %v2404, -inf
        %v2414 = vmax.f32 %v2407, %v2413
        %v2415 = vmax.f32 %v2410, %v2412
        %v2416 = vmax.f32 %v2414, %v2408
        %v2417 = vmax.f32 %v2415, %v2416
        %v2418 = vsub.f32 %v2398, %v2417
        %v2419 = vsub.f32 %v2399, %v2417
        %v2420 = vsub.f32 %v2400, %v2417
        %v2421 = vsub.f32 %v2401, %v2417
        %v2422 = vsub.f32 %v2402, %v2417
        %v2423 = vsub.f32 %v2403, %v2417
        %v2424 = vsub.f32 %v2404, %v2417
        %v2425 = vmul.f32 %v2418, 1.442695
        %v2426 = vpow.pop %v2425
        %v2427 = vmul.f32 %v2419, 1.442695
        %v2428 = vpow.pop %v2427
        %v2429 = vmul.f32 %v2420, 1.442695
        %v2430 = vpow.pop %v2429
        %v2431 = vmul.f32 %v2421, 1.442695
        %v2432 = vpow.pop %v2431
        %v2433 = vmul.f32 %v2422, 1.442695
        %v2434 = vpow.pop %v2433
        %v2435 = vmul.f32 %v2423, 1.442695
        %v2436 = vpow.pop %v2435
        %v2437 = vmul.f32 %v2424, 1.442695
        %v2438 = vpow.pop %v2437
        %v2439 = vsel %vm1916, %v2426, 0.0
        %v2440 = vsel %vm1916, %v2428, 0.0
        %v2441 = vadd.f32 %v2439, %v2440
        %v2442 = vsel %vm1916, %v2430, 0.0
        %v2443 = vadd.f32 %v2441, %v2442
        %v2444 = vsel %vm1916, %v2432, 0.0
        %v2445 = vadd.f32 %v2443, %v2444
        %v2446 = vsel %vm1916, %v2434, 0.0
        %v2447 = vadd.f32 %v2445, %v2446
        %v2448 = vsel %vm1916, %v2436, 0.0
        %v2449 = vadd.f32 %v2447, %v2448
        %v2450 = vsel %vm1916, %v2438, 0.0
        %v2451 = vadd.f32 %v2449, %v2450
        %v2452 = vrcp.pop %v2451
        %v2453 = vmul.f32 %v1838, %v2452
        %v2454 = vmul.f32 %v2453, %v2426
        %v2455 = vmul.f32 %v2453, %v2428
        %v2456 = vmul.f32 %v2453, %v2430
        %v2457 = vmul.f32 %v2453, %v2432
        %v2458 = vmul.f32 %v2453, %v2434
        %v2459 = vmul.f32 %v2453, %v2436
        %v2460 = vmul.f32 %v2453, %v2438
        %v2461 = vpack.c.bf16 %v2454, %v2454
        %v2462 = vpack.c.bf16 %v2455, %v2455
        %v2463 = vpack.c.bf16 %v2456, %v2456
        %v2464 = vpack.c.bf16 %v2457, %v2457
        %v2465 = vpack.c.bf16 %v2458, %v2458
        %v2466 = vpack.c.bf16 %v2459, %v2459
        %v2467 = vpack.c.bf16 %v2460, %v2460
        %vm2468 = vcmask 60416
        %2469 = vst.msk [vmem:[%s500] sm:$0xf] %vm2468, %v2461
        %2470 = vst.msk [vmem:[%s500 + $0x4] sm:$0xf] %vm2468, %v2462
        %2471 = vst.msk [vmem:[%s500 + $0x8] sm:$0xf] %vm2468, %v2463
        %2472 = vst.msk [vmem:[%s500 + $0xc] sm:$0xf] %vm2468, %v2464
        %2473 = vst.msk [vmem:[%s500 + $0x10] sm:$0xf] %vm2468, %v2465
        %2474 = vst.msk [vmem:[%s500 + $0x14] sm:$0xf] %vm2468, %v2466
        %2475 = vst.msk [vmem:[%s500 + $0x18] sm:$0xf] %vm2468, %v2467
        %p2476 = scmp.lt.s32.totalorder %s27, 1
        %s2477 = scalar_select %p2476, %s27, 1
        %p2478 = scmp.lt.s32.totalorder %s29, 0
        %s2479 = scalar_select %p2478, %s29, 0
        %p2480 = scmp.lt.s32.totalorder %s28, 0
        %s2481 = scalar_select %p2480, %s28, 0
        %s2482 = sadd.s32 %s2481, %s2479
        %s2483 = smul.addr %s2477, 7
        %s2484 = sadd.s32 %s2482, %s2483
        %s2485 = smul.addr %s2484, 4
        %s2486 = scalar_lea.vmem %s10, %s2485
        // Predicated region
        $region69: #{_lambda_.1} parent=59 // pred_check
          %p2487 = pneg %p301
        $region70: #{_lambda_.1} parent=59 // pred_check_branch
          %2489 = sbr.rel (%p2487) target = $region72
        $region71: #{_lambda_.1} parent=59 // pred_region
          _
        $region72: #{_lambda_.1} parent=59 // pred_fallthru
          _
      $region60: #{_lambda_.1} parent=5 // pred_fallthru
        _
      %p2490 = scmp.le.s32.totalorder 2, %s17
      // Predicated region
      $region73: #{_lambda_.1} parent=5 // pred_check
        %p2491 = pneg %p2490
      $region74: #{_lambda_.1} parent=5 // pred_check_branch
        %2493 = sbr.rel (%p2491) target = $region76
      $region75: #{_lambda_.1} parent=5 // pred_region
        %s2494 = ssub.s32 %s17, 2
        // Predicated region
        $region77: #{_lambda_.1} parent=75 // pred_check
          %p2495 = pneg %p307
        $region78: #{_lambda_.1} parent=75 // pred_check_branch
          %2497 = sbr.rel (%p2495) target = $region80
        $region79: #{_lambda_.1} parent=75 // pred_region
          %p2498 = scmp.lt.s32.totalorder %s30, 1
          %s2499 = scalar_select %p2498, %s30, 1
          %p2500 = scmp.lt.s32.totalorder %s32, 0
          %s2501 = scalar_select %p2500, %s32, 0
          %p2502 = scmp.lt.s32.totalorder %s31, 0
          %s2503 = scalar_select %p2502, %s31, 0
          %s2504 = sadd.s32 %s2503, %s2501
          %s2505 = smul.addr %s2499, 7
          %s2506 = sadd.s32 %s2504, %s2505
          %s2507 = smul.addr %s2506, 4
          %s2508 = scalar_lea.vmem %s10, %s2507
        $region80: #{_lambda_.1} parent=75 // pred_fallthru
          _
      $region76: #{_lambda_.1} parent=5 // pred_fallthru
        _
    $region6: #{_lambda_.1} parent=1 // loop_footer
      %s21 = sadd.s32 1, %s17
    $region7: #{_lambda_.1} parent=1 // loop_footer_branch
      %16 = sbr.rel target = $region3
    $region8: #{_lambda_.1} parent=1 // loop_exit
      _
    %2509 = vsyncpa [#allocation6], 1
    %s2510 = scalar_lea.sflag [#allocation6], 1
    %2511 = vsyncpa %s2510, 1

</llo_original>
